<compile_context>
chip_gen: v6e
topology: v6e:2x2x1
jax: 0.10.0
libtpu: 0.0.40
codegen_flags: <defaults>
</compile_context>

<pallas_src>
import functools

import jax
import jax.numpy as jnp
from jax import lax
from jax.experimental import pallas as pl
from jax.experimental.pallas import tpu as pltpu


_N_BANKS = 8               # scatter-accumulator banks (sparse fallback path)
_DENSE_MAX_NODES = 1024    # size threshold for the MXU one-hot path
_DENSE_MAX_EDGES = 4096


def _round_up(x, m):
    return (x + m - 1) // m * m


# ----------------------------- kernel helpers -----------------------------

def _graph_norm(x, w, b, alpha, row_mask, inv_n, eps=1e-5):
    # Normalize over nodes (rows), per feature.  Padded rows are masked out of
    # the statistics; padded feature columns are all-zero and stay zero.
    mean = jnp.sum(x * row_mask, axis=0, keepdims=True) * inv_n
    sub = x - alpha * mean
    sub_mean = (1.0 - alpha) * mean                  # mean over valid rows of sub
    dev = (sub - sub_mean) * row_mask
    var = jnp.sum(dev * dev, axis=0, keepdims=True) * inv_n
    return w * sub * lax.rsqrt(var + eps) + b


def _mlp_and_jk(l, n_nodes, eps, h, agg,
                w1, b1, g1w, g1b, g1a, w2, b2, bnw, bnb, bna,
                h_scr, out_ref):
    """GIN combine + MLP + per-layer GraphNorm + (relu if not last) + JK max."""
    num_layers = pl.num_programs(0)
    row_mask = (lax.broadcasted_iota(jnp.int32, (h.shape[0], 1), 0)
                < n_nodes).astype(jnp.float32)
    inv_n = 1.0 / float(n_nodes)

    pre = (1.0 + eps) * h + agg
    hid = jnp.dot(pre, w1, preferred_element_type=jnp.float32) + b1
    hid = jnp.maximum(_graph_norm(hid, g1w, g1b, g1a, row_mask, inv_n), 0.0)
    out = jnp.dot(hid, w2, preferred_element_type=jnp.float32) + b2
    out = _graph_norm(out, bnw, bnb, bna, row_mask, inv_n)      # batch_norms[l]

    # residual=False: carry new state.  ReLU on all but the last layer
    # (dropout is identity in eval mode).
    h_scr[...] = out

    @pl.when(l != num_layers - 1)
    def _():
        h_scr[...] = jnp.maximum(h_scr[...], 0.0)

    # out_ref has a constant block index across the layer axis -> it stays
    # resident in VMEM and serves directly as the running JK max.
    out_ref[...] = jnp.maximum(out_ref[...], h_scr[...])


def _unpack_vecs(vh, vd):
    b1, g1w, g1b, g1a = vh[0:1], vh[1:2], vh[2:3], vh[3:4]
    be, b2, bnw, bnb, bna = vd[0:1], vd[1:2], vd[2:3], vd[3:4], vd[4:5]
    return be, b1, g1w, g1b, g1a, b2, bnw, bnb, bna


# --------------------- dense (small-graph) MXU path ------------------------

def _gnn_node_dense_kernel(n_nodes,
                           # inputs
                           h0_ref, ea_ref, goh_ref, soh_ref, eps_ref,
                           we_ref, w1_ref, w2_ref, vh_ref, vd_ref,
                           # output
                           out_ref,
                           # scratch
                           h_scr):
    l = pl.program_id(0)

    @pl.when(l == 0)
    def _():
        h_scr[...] = h0_ref[...]
        out_ref[...] = h0_ref[...]        # JK='max' includes h0

    vh = vh_ref[...]
    vd = vd_ref[...]
    be, b1, g1w, g1b, g1a, b2, bnw, bnb, bna = _unpack_vecs(vh, vd)

    h = h_scr[...]

    # Edge encoder: [Ep, 8] @ [8, Dp] + b  (bf16 weight upcast to f32, MXU)
    emb = jnp.dot(ea_ref[...], we_ref[...].astype(jnp.float32),
                  preferred_element_type=jnp.float32) + be

    # Gather source rows, full-width message, scatter-add -- all on the MXU.
    # Padded edges map to no node in either one-hot, so they contribute nothing.
    h_src = jnp.dot(goh_ref[...], h, preferred_element_type=jnp.float32)   # (Ep, Dp)
    msg = jnp.maximum(h_src + emb, 0.0)                                     # relu(x_j + e)
    agg = jnp.dot(soh_ref[...], msg, preferred_element_type=jnp.float32)   # (Np, Dp)

    eps = eps_ref[l, 0]                                                     # SMEM scalar
    _mlp_and_jk(l, n_nodes, eps, h, agg,
                w1_ref[...].astype(jnp.float32), b1, g1w, g1b, g1a,
                w2_ref[...].astype(jnp.float32), b2, bnw, bnb, bna,
                h_scr, out_ref)


# --------------------- sparse (large-graph) loop path -----------------------

def _gnn_node_sparse_kernel(n_nodes, n_edges,
                            # scalar-prefetch refs (SMEM)
                            src_ref, dst_ref,
                            # inputs
                            h0_ref, ea_ref, eps_ref,
                            we_ref, w1_ref, w2_ref, vh_ref, vd_ref,
                            # output
                            out_ref,
                            # scratch
                            h_scr, emb_scr, agg_scr):
    l = pl.program_id(0)

    @pl.when(l == 0)
    def _():
        h_scr[...] = h0_ref[...]
        out_ref[...] = h0_ref[...]

    vh = vh_ref[...]
    vd = vd_ref[...]
    be, b1, g1w, g1b, g1a, b2, bnw, bnb, bna = _unpack_vecs(vh, vd)

    # Edge embeddings for all edges, full width (MXU).
    emb_scr[...] = jnp.dot(ea_ref[...], we_ref[...].astype(jnp.float32),
                           preferred_element_type=jnp.float32) + be

    # Banked scatter-add: edge e accumulates into bank e % K so consecutive
    # iterations never RMW the same buffer (K-way ILP on the critical chain).
    agg_scr[...] = jnp.zeros_like(agg_scr)

    def edge_body(e, carry):
        s = src_ref[e]
        d = dst_ref[e]
        bank = lax.rem(e, _N_BANKS)
        msg = jnp.maximum(h_scr[pl.ds(s, 1), :] + emb_scr[pl.ds(e, 1), :], 0.0)
        agg_scr[bank, pl.ds(d, 1), :] = agg_scr[bank, pl.ds(d, 1), :] + msg
        return carry

    lax.fori_loop(0, n_edges, edge_body, 0, unroll=_N_BANKS)

    agg = jnp.sum(agg_scr[...], axis=0)

    eps = eps_ref[l, 0]
    _mlp_and_jk(l, n_nodes, eps, h_scr[...], agg,
                w1_ref[...].astype(jnp.float32), b1, g1w, g1b, g1a,
                w2_ref[...].astype(jnp.float32), b2, bnw, bnb, bna,
                h_scr, out_ref)


# ----------------------------- wrapper -----------------------------

def gnn_node_forward(node_emb, edge_index, edge_attr, layer_params, n_nodes):
    """Fused GNN_node forward (gin, JK='max', residual=False), eval mode."""
    D = node_emb.shape[1]
    L = len(layer_params)
    E = edge_attr.shape[0]

    Dp = _round_up(D, 128)          # lane-pad node feature dim
    Hp = 2 * Dp                     # padded hidden dim of the GIN MLP
    EAp = 8                         # edge-attr contraction dim padded 7 -> 8
    Np = _round_up(n_nodes, 8)
    Ep = _round_up(E, 8)

    f32 = jnp.float32
    bf16 = jnp.bfloat16

    # node_encoder: Embedding(1, D), all node indices are 0 -> broadcast row 0.
    h0 = jnp.zeros((Np, Dp), f32).at[:n_nodes, :D].set(
        jnp.broadcast_to(node_emb[0].astype(f32), (n_nodes, D)))
    ea = jnp.zeros((Ep, EAp), f32).at[:E, :7].set(edge_attr.astype(f32))

    def pad2(x, r, c, dt=f32):
        return (jnp.zeros((r, c), f32)
                .at[:x.shape[0], :x.shape[1]].set(x.astype(f32)).astype(dt))

    def pack_rows(rows, c):
        m = jnp.zeros((8, c), f32)
        for i, r in enumerate(rows):
            m = m.at[i, :r.shape[1]].set(r.reshape(-1).astype(f32))
        return m

    # Per-layer parameters, stacked along a leading "layer" axis.
    We = jnp.stack([pad2(p["edge_W"], EAp, Dp, bf16) for p in layer_params])
    W1 = jnp.stack([pad2(p["W1"], Dp, Hp, bf16) for p in layer_params])
    W2 = jnp.stack([pad2(p["W2"], Hp, Dp, bf16) for p in layer_params])
    eps = jnp.stack([p["eps"].reshape(1) for p in layer_params]).astype(f32)
    # Packed vectors: rows [b1, g1w, g1b, g1a] (Hp) / [be, b2, bnw, bnb, bna] (Dp).
    Vh = jnp.stack([pack_rows([p["b1"], p["g1w"], p["g1b"], p["g1a"]], Hp)
                    for p in layer_params])
    Vd = jnp.stack([pack_rows([p["edge_b"], p["b2"], p["bnw"], p["bnb"], p["bna"]], Dp)
                    for p in layer_params])

    src = edge_index[0].astype(jnp.int32)
    dst = edge_index[1].astype(jnp.int32)
    # Padded edges map to index -1 so they match no node in the one-hot path.
    src_p = jnp.full((Ep,), -1, jnp.int32).at[:E].set(src)
    dst_p = jnp.full((Ep,), -1, jnp.int32).at[:E].set(dst)

    def fixed(shape):
        return pl.BlockSpec(shape, lambda l, *_: (0,) * len(shape))

    def per_layer(shape):
        return pl.BlockSpec((None,) + shape,
                            lambda l, *_: (l,) + (0,) * len(shape))

    # Generation-aware VMEM budget (v7x has 64 MiB/TC; v5e default scoped is low).
    try:
        info = pltpu.get_tpu_info()
        vmem_cap = getattr(info, "vmem_capacity_bytes", 64 * 1024 * 1024)
    except Exception:
        vmem_cap = 64 * 1024 * 1024
    vmem_limit = max(32 * 1024 * 1024,
                     min(int(vmem_cap * 3 // 4), 100 * 1024 * 1024))

    use_dense = (n_nodes <= _DENSE_MAX_NODES) and (E <= _DENSE_MAX_EDGES)

    if use_dense:
        # One-hot gather (Ep, Np) and scatter (Np, Ep) matrices, built once.
        gather_oh = (src_p[:, None] == jnp.arange(Np)[None, :]).astype(f32)
        scatter_oh = (dst_p[None, :] == jnp.arange(Np)[:, None]).astype(f32)

        grid_spec = pltpu.PrefetchScalarGridSpec(
            num_scalar_prefetch=0,
            grid=(L,),
            in_specs=[
                fixed((Np, Dp)),                                    # h0
                fixed((Ep, EAp)),                                   # edge_attr
                fixed((Ep, Np)),                                    # gather one-hot
                fixed((Np, Ep)),                                    # scatter one-hot
                pl.BlockSpec(memory_space=pltpu.MemorySpace.SMEM),  # eps [L, 1]
                per_layer((EAp, Dp)),                               # edge encoder W (bf16)
                per_layer((Dp, Hp)),                                # W1 (bf16)
                per_layer((Hp, Dp)),                                # W2 (bf16)
                per_layer((8, Hp)),                                 # packed Hp vectors
                per_layer((8, Dp)),                                 # packed Dp vectors
            ],
            out_specs=pl.BlockSpec((Np, Dp), lambda l, *_: (0, 0)),
            scratch_shapes=[pltpu.VMEM((Np, Dp), f32)],             # resident node state
        )
        out = pl.pallas_call(
            functools.partial(_gnn_node_dense_kernel, n_nodes),
            out_shape=jax.ShapeDtypeStruct((Np, Dp), f32),
            grid_spec=grid_spec,
            compiler_params=pltpu.CompilerParams(
                dimension_semantics=("arbitrary",),      # layers are sequential
                vmem_limit_bytes=vmem_limit,
            ),
        )(h0, ea, gather_oh, scatter_oh, eps, We, W1, W2, Vh, Vd)
    else:
        grid_spec = pltpu.PrefetchScalarGridSpec(
            num_scalar_prefetch=2,                  # src, dst edge indices -> SMEM
            grid=(L,),
            in_specs=[
                fixed((Np, Dp)),                                    # h0
                fixed((Ep, EAp)),                                   # edge_attr
                pl.BlockSpec(memory_space=pltpu.MemorySpace.SMEM),  # eps [L, 1]
                per_layer((EAp, Dp)),                               # edge encoder W (bf16)
                per_layer((Dp, Hp)),                                # W1 (bf16)
                per_layer((Hp, Dp)),                                # W2 (bf16)
                per_layer((8, Hp)),                                 # packed Hp vectors
                per_layer((8, Dp)),                                 # packed Dp vectors
            ],
            out_specs=pl.BlockSpec((Np, Dp), lambda l, *_: (0, 0)),
            scratch_shapes=[
                pltpu.VMEM((Np, Dp), f32),               # resident node state h
                pltpu.VMEM((Ep, Dp), f32),               # edge embeddings / messages
                pltpu.VMEM((_N_BANKS, Np, Dp), f32),     # banked scatter accumulators
            ],
        )
        out = pl.pallas_call(
            functools.partial(_gnn_node_sparse_kernel, n_nodes, E),
            out_shape=jax.ShapeDtypeStruct((Np, Dp), f32),
            grid_spec=grid_spec,
            compiler_params=pltpu.CompilerParams(
                dimension_semantics=("arbitrary",),
                vmem_limit_bytes=vmem_limit,
            ),
        )(src, dst, h0, ea, eps, We, W1, W2, Vh, Vd)

    return out[:n_nodes, :D]


# ----------------------------- parameter setup -----------------------------

def xavier(key, shape, gain=1.0):
    fan_in, fan_out = shape
    std = gain * (2.0 / (fan_in + fan_out)) ** 0.5
    return std * jax.random.normal(key, shape, dtype=jnp.float32)


def make_layer_params(key, emb_dim):
    D = emb_dim
    ks = jax.random.split(key, 6)
    return dict(
        edge_W=xavier(ks[0], (7, D)),                                   # Linear(7, D)
        edge_b=0.01 * jax.random.normal(ks[1], (1, D), dtype=jnp.float32),
        eps=jnp.zeros((1,), dtype=jnp.float32),                         # GIN eps init 0
        W1=xavier(ks[2], (D, 2 * D)),
        b1=0.01 * jax.random.normal(ks[3], (1, 2 * D), dtype=jnp.float32),
        g1w=jnp.ones((1, 2 * D), dtype=jnp.float32),
        g1b=jnp.zeros((1, 2 * D), dtype=jnp.float32),
        g1a=jnp.ones((1, 2 * D), dtype=jnp.float32),
        W2=xavier(ks[4], (2 * D, D)),
        b2=0.01 * jax.random.normal(ks[5], (1, D), dtype=jnp.float32),
        bnw=jnp.ones((1, D), dtype=jnp.float32),
        bnb=jnp.zeros((1, D), dtype=jnp.float32),
        bna=jnp.ones((1, D), dtype=jnp.float32),
    )


# ----------------------------- main -----------------------------

if __name__ == "__main__":
    key = jax.random.PRNGKey(0)
    num_layer = 2
    emb_dim = 32
    N = 16       # nodes
    E = 32       # edges

    k_nodeemb, k_ei0, k_ei1, k_ea, k_params = jax.random.split(key, 5)

    edge_index = jnp.stack([
        jax.random.randint(k_ei0, (E,), 0, N),
        jax.random.randint(k_ei1, (E,), 0, N),
    ], axis=0).astype(jnp.int32)                                       # [2, E]
    edge_attr = jax.random.normal(k_ea, (E, 7), dtype=jnp.float32)     # [E, 7]
    node_emb = jax.random.normal(k_nodeemb, (1, emb_dim), dtype=jnp.float32)

    pkeys = jax.random.split(k_params, num_layer)
    layer_params = [make_layer_params(pkeys[i], emb_dim) for i in range(num_layer)]

    out = gnn_node_forward(node_emb, edge_index, edge_attr, layer_params, N)
    out = jax.block_until_ready(out)
    assert out.shape == (N, emb_dim) and out.dtype == jnp.float32
    print("KERNEL_OK")
</pallas_src>

<mosaic_0001>
module attributes {stable_mosaic.version = 11 : i64} {
  func.func @_gnn_node_dense_kernel(%arg0: i32, %arg1: memref<16x128xf32, #tpu.memory_space<vmem>>, %arg2: memref<32x8xf32, #tpu.memory_space<vmem>>, %arg3: memref<32x16xf32, #tpu.memory_space<vmem>>, %arg4: memref<16x32xf32, #tpu.memory_space<vmem>>, %arg5: memref<2x1xf32, #tpu.memory_space<smem>>, %arg6: memref<1x8x128xbf16, #tpu.memory_space<vmem>>, %arg7: memref<1x128x256xbf16, #tpu.memory_space<vmem>>, %arg8: memref<1x256x128xbf16, #tpu.memory_space<vmem>>, %arg9: memref<1x8x256xf32, #tpu.memory_space<vmem>>, %arg10: memref<1x8x128xf32, #tpu.memory_space<vmem>>, %arg11: memref<16x128xf32, #tpu.memory_space<vmem>>, %arg12: memref<16x128xf32, #tpu.memory_space<vmem>>) attributes {dimension_semantics = [#tpu.dimension_semantics<arbitrary>], iteration_bounds = array<i64: 2>, scalar_prefetch = 0 : i64, scratch_operands = 1 : i64, tpu.core_type = #tpu.core_type<tc>, window_params = [{pipeline_mode = #tpu.pipeline_mode<synchronous>, transform_indices = @transform_0, window_bounds = array<i64: 16, 128>}, {pipeline_mode = #tpu.pipeline_mode<synchronous>, transform_indices = @transform_1, window_bounds = array<i64: 32, 8>}, {pipeline_mode = #tpu.pipeline_mode<synchronous>, transform_indices = @transform_2, window_bounds = array<i64: 32, 16>}, {pipeline_mode = #tpu.pipeline_mode<synchronous>, transform_indices = @transform_3, window_bounds = array<i64: 16, 32>}, {transform_indices = @transform_4, window_bounds = array<i64: 2, 1>}, {transform_indices = @transform_5, window_bounds = array<i64: 1, 8, 128>}, {transform_indices = @transform_6, window_bounds = array<i64: 1, 128, 256>}, {transform_indices = @transform_7, window_bounds = array<i64: 1, 256, 128>}, {transform_indices = @transform_8, window_bounds = array<i64: 1, 8, 256>}, {transform_indices = @transform_9, window_bounds = array<i64: 1, 8, 128>}, {pipeline_mode = #tpu.pipeline_mode<synchronous>, transform_indices = @transform_10, window_bounds = array<i64: 16, 128>}]} {
    %c0_i32 = arith.constant 0 : i32
    %0 = arith.cmpi eq, %arg0, %c0_i32 : i32
    %1 = arith.extui %0 : i1 to i32
    %c0_i32_0 = arith.constant 0 : i32
    %2 = arith.cmpi ne, %1, %c0_i32_0 : i32
    scf.if %2 {
      %c0_52 = arith.constant 0 : index
      %c0_53 = arith.constant 0 : index
      %124 = vector.load %arg1[%c0_52, %c0_53] : memref<16x128xf32, #tpu.memory_space<vmem>>, vector<16x128xf32>
      %c0_54 = arith.constant 0 : index
      %c0_55 = arith.constant 0 : index
      %125 = vector.load %arg12[%c0_54, %c0_55] : memref<16x128xf32, #tpu.memory_space<vmem>>, vector<16x128xf32>
      tpu.vector_store %arg12[%c0_54, %c0_55], %124 {strides = array<i32>} : memref<16x128xf32, #tpu.memory_space<vmem>>, vector<16x128xf32>,
      %c0_56 = arith.constant 0 : index
      %c0_57 = arith.constant 0 : index
      %126 = vector.load %arg1[%c0_56, %c0_57] : memref<16x128xf32, #tpu.memory_space<vmem>>, vector<16x128xf32>
      %c0_58 = arith.constant 0 : index
      %c0_59 = arith.constant 0 : index
      %127 = vector.load %arg11[%c0_58, %c0_59] : memref<16x128xf32, #tpu.memory_space<vmem>>, vector<16x128xf32>
      tpu.vector_store %arg11[%c0_58, %c0_59], %126 {strides = array<i32>} : memref<16x128xf32, #tpu.memory_space<vmem>>, vector<16x128xf32>,
    } else {
    }
    %c0 = arith.constant 0 : index
    %c0_1 = arith.constant 0 : index
    %c0_2 = arith.constant 0 : index
    %3 = vector.load %arg9[%c0, %c0_1, %c0_2] : memref<1x8x256xf32, #tpu.memory_space<vmem>>, vector<1x8x256xf32>
    %4 = vector.shape_cast %3 : vector<1x8x256xf32> to vector<8x256xf32>
    %c0_3 = arith.constant 0 : index
    %c0_4 = arith.constant 0 : index
    %c0_5 = arith.constant 0 : index
    %5 = vector.load %arg10[%c0_3, %c0_4, %c0_5] : memref<1x8x128xf32, #tpu.memory_space<vmem>>, vector<1x8x128xf32>
    %6 = vector.shape_cast %5 : vector<1x8x128xf32> to vector<8x128xf32>
    %7 = vector.extract_strided_slice %4 {offsets = [0, 0], sizes = [1, 256], strides = [1, 1]} : vector<8x256xf32> to vector<1x256xf32>
    %8 = vector.extract_strided_slice %4 {offsets = [1, 0], sizes = [1, 256], strides = [1, 1]} : vector<8x256xf32> to vector<1x256xf32>
    %9 = vector.extract_strided_slice %4 {offsets = [2, 0], sizes = [1, 256], strides = [1, 1]} : vector<8x256xf32> to vector<1x256xf32>
    %10 = vector.extract_strided_slice %4 {offsets = [3, 0], sizes = [1, 256], strides = [1, 1]} : vector<8x256xf32> to vector<1x256xf32>
    %11 = vector.extract_strided_slice %6 {offsets = [0, 0], sizes = [1, 128], strides = [1, 1]} : vector<8x128xf32> to vector<1x128xf32>
    %12 = vector.extract_strided_slice %6 {offsets = [1, 0], sizes = [1, 128], strides = [1, 1]} : vector<8x128xf32> to vector<1x128xf32>
    %13 = vector.extract_strided_slice %6 {offsets = [2, 0], sizes = [1, 128], strides = [1, 1]} : vector<8x128xf32> to vector<1x128xf32>
    %14 = vector.extract_strided_slice %6 {offsets = [3, 0], sizes = [1, 128], strides = [1, 1]} : vector<8x128xf32> to vector<1x128xf32>
    %15 = vector.extract_strided_slice %6 {offsets = [4, 0], sizes = [1, 128], strides = [1, 1]} : vector<8x128xf32> to vector<1x128xf32>
    %c0_6 = arith.constant 0 : index
    %c0_7 = arith.constant 0 : index
    %16 = vector.load %arg12[%c0_6, %c0_7] : memref<16x128xf32, #tpu.memory_space<vmem>>, vector<16x128xf32>
    %c0_8 = arith.constant 0 : index
    %c0_9 = arith.constant 0 : index
    %17 = vector.load %arg2[%c0_8, %c0_9] : memref<32x8xf32, #tpu.memory_space<vmem>>, vector<32x8xf32>
    %c0_10 = arith.constant 0 : index
    %c0_11 = arith.constant 0 : index
    %c0_12 = arith.constant 0 : index
    %18 = vector.load %arg6[%c0_10, %c0_11, %c0_12] : memref<1x8x128xbf16, #tpu.memory_space<vmem>>, vector<1x8x128xbf16>
    %19 = vector.shape_cast %18 : vector<1x8x128xbf16> to vector<8x128xbf16>
    %20 = arith.extf %19 : vector<8x128xbf16> to vector<8x128xf32>
    %cst = arith.constant dense<0.000000e+00> : vector<32x128xf32>
    %21 = tpu.matmul %17, %20, %cst {dimension_numbers = #tpu.dot_dimension_numbers<[1], [0], [0], [1], [0, 0, 1, 1], [], []>} : vector<32x8xf32>, vector<8x128xf32>, vector<32x128xf32> -> vector<32x128xf32>
    %22 = vector.broadcast %11 : vector<1x128xf32> to vector<32x128xf32>
    %23 = arith.addf %21, %22 : vector<32x128xf32>
    %c0_13 = arith.constant 0 : index
    %c0_14 = arith.constant 0 : index
    %24 = vector.load %arg3[%c0_13, %c0_14] : memref<32x16xf32, #tpu.memory_space<vmem>>, vector<32x16xf32>
    %cst_15 = arith.constant dense<0.000000e+00> : vector<32x128xf32>
    %25 = tpu.matmul %24, %16, %cst_15 {dimension_numbers = #tpu.dot_dimension_numbers<[1], [0], [0], [1], [0, 0, 1, 1], [], []>} : vector<32x16xf32>, vector<16x128xf32>, vector<32x128xf32> -> vector<32x128xf32>
    %26 = arith.addf %25, %23 : vector<32x128xf32>
    %cst_16 = arith.constant 0.000000e+00 : f32
    %27 = vector.broadcast %cst_16 : f32 to vector<32x128xf32>
    %28 = arith.maximumf %26, %27 : vector<32x128xf32>
    %c0_17 = arith.constant 0 : index
    %c0_18 = arith.constant 0 : index
    %29 = vector.load %arg4[%c0_17, %c0_18] : memref<16x32xf32, #tpu.memory_space<vmem>>, vector<16x32xf32>
    %cst_19 = arith.constant dense<0.000000e+00> : vector<16x128xf32>
    %30 = tpu.matmul %29, %28, %cst_19 {dimension_numbers = #tpu.dot_dimension_numbers<[1], [0], [0], [1], [0, 0, 1, 1], [], []>} : vector<16x32xf32>, vector<32x128xf32>, vector<16x128xf32> -> vector<16x128xf32>
    %31 = arith.index_cast %arg0 : i32 to index
    %c0_20 = arith.constant 0 : index
    %32 = memref.load %arg5[%31, %c0_20] : memref<2x1xf32, #tpu.memory_space<smem>>
    %c0_21 = arith.constant 0 : index
    %c0_22 = arith.constant 0 : index
    %c0_23 = arith.constant 0 : index
    %33 = vector.load %arg7[%c0_21, %c0_22, %c0_23] : memref<1x128x256xbf16, #tpu.memory_space<vmem>>, vector<1x128x256xbf16>
    %34 = vector.shape_cast %33 : vector<1x128x256xbf16> to vector<128x256xbf16>
    %35 = arith.extf %34 : vector<128x256xbf16> to vector<128x256xf32>
    %c0_24 = arith.constant 0 : index
    %c0_25 = arith.constant 0 : index
    %c0_26 = arith.constant 0 : index
    %36 = vector.load %arg8[%c0_24, %c0_25, %c0_26] : memref<1x256x128xbf16, #tpu.memory_space<vmem>>, vector<1x256x128xbf16>
    %37 = vector.shape_cast %36 : vector<1x256x128xbf16> to vector<256x128xbf16>
    %38 = arith.extf %37 : vector<256x128xbf16> to vector<256x128xf32>
    %39 = tpu.iota {dimensions = array<i32: 0>} : vector<16x1xi32>
    %c16_i32 = arith.constant 16 : i32
    %40 = vector.broadcast %c16_i32 : i32 to vector<16x1xi32>
    %41 = arith.cmpi slt, %39, %40 : vector<16x1xi32>
    %42 = arith.extui %41 : vector<16x1xi1> to vector<16x1xi32>
    %43 = arith.sitofp %42 : vector<16x1xi32> to vector<16x1xf32>
    %cst_27 = arith.constant 1.000000e+00 : f32
    %44 = arith.addf %cst_27, %32 : f32
    %45 = vector.broadcast %44 : f32 to vector<16x128xf32>
    %46 = arith.mulf %45, %16 : vector<16x128xf32>
    %47 = arith.addf %46, %30 : vector<16x128xf32>
    %cst_28 = arith.constant dense<0.000000e+00> : vector<16x256xf32>
    %48 = tpu.matmul %47, %35, %cst_28 {dimension_numbers = #tpu.dot_dimension_numbers<[1], [0], [0], [1], [0, 0, 1, 1], [], []>} : vector<16x128xf32>, vector<128x256xf32>, vector<16x256xf32> -> vector<16x256xf32>
    %49 = vector.broadcast %7 : vector<1x256xf32> to vector<16x256xf32>
    %50 = arith.addf %48, %49 : vector<16x256xf32>
    %51 = vector.broadcast %43 : vector<16x1xf32> to vector<16x256xf32>
    %52 = arith.mulf %50, %51 : vector<16x256xf32>
    %cst_29 = arith.constant dense<0.000000e+00> : vector<256xf32>
    %53 = vector.multi_reduction <add>, %52, %cst_29 [0] : vector<16x256xf32> to vector<256xf32>
    %54 = vector.shape_cast %53 : vector<256xf32> to vector<1x256xf32>
    %cst_30 = arith.constant 6.250000e-02 : f32
    %55 = vector.broadcast %cst_30 : f32 to vector<1x256xf32>
    %56 = arith.mulf %54, %55 : vector<1x256xf32>
    %57 = arith.mulf %10, %56 : vector<1x256xf32>
    %58 = vector.broadcast %57 : vector<1x256xf32> to vector<16x256xf32>
    %59 = arith.subf %50, %58 : vector<16x256xf32>
    %cst_31 = arith.constant 1.000000e+00 : f32
    %60 = vector.broadcast %cst_31 : f32 to vector<1x256xf32>
    %61 = arith.subf %60, %10 : vector<1x256xf32>
    %62 = arith.mulf %61, %56 : vector<1x256xf32>
    %63 = vector.broadcast %62 : vector<1x256xf32> to vector<16x256xf32>
    %64 = arith.subf %59, %63 : vector<16x256xf32>
    %65 = vector.broadcast %43 : vector<16x1xf32> to vector<16x256xf32>
    %66 = arith.mulf %64, %65 : vector<16x256xf32>
    %67 = arith.mulf %66, %66 : vector<16x256xf32>
    %cst_32 = arith.constant dense<0.000000e+00> : vector<256xf32>
    %68 = vector.multi_reduction <add>, %67, %cst_32 [0] : vector<16x256xf32> to vector<256xf32>
    %69 = vector.shape_cast %68 : vector<256xf32> to vector<1x256xf32>
    %cst_33 = arith.constant 6.250000e-02 : f32
    %70 = vector.broadcast %cst_33 : f32 to vector<1x256xf32>
    %71 = arith.mulf %69, %70 : vector<1x256xf32>
    %72 = vector.broadcast %8 : vector<1x256xf32> to vector<16x256xf32>
    %73 = arith.mulf %72, %59 : vector<16x256xf32>
    %cst_34 = arith.constant 9.99999974E-6 : f32
    %74 = vector.broadcast %cst_34 : f32 to vector<1x256xf32>
    %75 = arith.addf %71, %74 : vector<1x256xf32>
    %76 = math.rsqrt %75 : vector<1x256xf32>
    %77 = vector.broadcast %76 : vector<1x256xf32> to vector<16x256xf32>
    %78 = arith.mulf %73, %77 : vector<16x256xf32>
    %79 = vector.broadcast %9 : vector<1x256xf32> to vector<16x256xf32>
    %80 = arith.addf %78, %79 : vector<16x256xf32>
    %cst_35 = arith.constant 0.000000e+00 : f32
    %81 = vector.broadcast %cst_35 : f32 to vector<16x256xf32>
    %82 = arith.maximumf %80, %81 : vector<16x256xf32>
    %cst_36 = arith.constant dense<0.000000e+00> : vector<16x128xf32>
    %83 = tpu.matmul %82, %38, %cst_36 {dimension_numbers = #tpu.dot_dimension_numbers<[1], [0], [0], [1], [0, 0, 1, 1], [], []>} : vector<16x256xf32>, vector<256x128xf32>, vector<16x128xf32> -> vector<16x128xf32>
    %84 = vector.broadcast %12 : vector<1x128xf32> to vector<16x128xf32>
    %85 = arith.addf %83, %84 : vector<16x128xf32>
    %86 = vector.broadcast %43 : vector<16x1xf32> to vector<16x128xf32>
    %87 = arith.mulf %85, %86 : vector<16x128xf32>
    %cst_37 = arith.constant dense<0.000000e+00> : vector<128xf32>
    %88 = vector.multi_reduction <add>, %87, %cst_37 [0] : vector<16x128xf32> to vector<128xf32>
    %89 = vector.shape_cast %88 : vector<128xf32> to vector<1x128xf32>
    %cst_38 = arith.constant 6.250000e-02 : f32
    %90 = vector.broadcast %cst_38 : f32 to vector<1x128xf32>
    %91 = arith.mulf %89, %90 : vector<1x128xf32>
    %92 = arith.mulf %15, %91 : vector<1x128xf32>
    %93 = vector.broadcast %92 : vector<1x128xf32> to vector<16x128xf32>
    %94 = arith.subf %85, %93 : vector<16x128xf32>
    %cst_39 = arith.constant 1.000000e+00 : f32
    %95 = vector.broadcast %cst_39 : f32 to vector<1x128xf32>
    %96 = arith.subf %95, %15 : vector<1x128xf32>
    %97 = arith.mulf %96, %91 : vector<1x128xf32>
    %98 = vector.broadcast %97 : vector<1x128xf32> to vector<16x128xf32>
    %99 = arith.subf %94, %98 : vector<16x128xf32>
    %100 = vector.broadcast %43 : vector<16x1xf32> to vector<16x128xf32>
    %101 = arith.mulf %99, %100 : vector<16x128xf32>
    %102 = arith.mulf %101, %101 : vector<16x128xf32>
    %cst_40 = arith.constant dense<0.000000e+00> : vector<128xf32>
    %103 = vector.multi_reduction <add>, %102, %cst_40 [0] : vector<16x128xf32> to vector<128xf32>
    %104 = vector.shape_cast %103 : vector<128xf32> to vector<1x128xf32>
    %cst_41 = arith.constant 6.250000e-02 : f32
    %105 = vector.broadcast %cst_41 : f32 to vector<1x128xf32>
    %106 = arith.mulf %104, %105 : vector<1x128xf32>
    %107 = vector.broadcast %13 : vector<1x128xf32> to vector<16x128xf32>
    %108 = arith.mulf %107, %94 : vector<16x128xf32>
    %cst_42 = arith.constant 9.99999974E-6 : f32
    %109 = vector.broadcast %cst_42 : f32 to vector<1x128xf32>
    %110 = arith.addf %106, %109 : vector<1x128xf32>
    %111 = math.rsqrt %110 : vector<1x128xf32>
    %112 = vector.broadcast %111 : vector<1x128xf32> to vector<16x128xf32>
    %113 = arith.mulf %108, %112 : vector<16x128xf32>
    %114 = vector.broadcast %14 : vector<1x128xf32> to vector<16x128xf32>
    %115 = arith.addf %113, %114 : vector<16x128xf32>
    %c0_43 = arith.constant 0 : index
    %c0_44 = arith.constant 0 : index
    %116 = vector.load %arg12[%c0_43, %c0_44] : memref<16x128xf32, #tpu.memory_space<vmem>>, vector<16x128xf32>
    tpu.vector_store %arg12[%c0_43, %c0_44], %115 {strides = array<i32>} : memref<16x128xf32, #tpu.memory_space<vmem>>, vector<16x128xf32>,
    %c1_i32 = arith.constant 1 : i32
    %117 = arith.cmpi ne, %arg0, %c1_i32 : i32
    %118 = arith.extui %117 : i1 to i32
    %c0_i32_45 = arith.constant 0 : i32
    %119 = arith.cmpi ne, %118, %c0_i32_45 : i32
    scf.if %119 {
      %c0_52 = arith.constant 0 : index
      %c0_53 = arith.constant 0 : index
      %124 = vector.load %arg12[%c0_52, %c0_53] : memref<16x128xf32, #tpu.memory_space<vmem>>, vector<16x128xf32>
      %cst_54 = arith.constant 0.000000e+00 : f32
      %125 = vector.broadcast %cst_54 : f32 to vector<16x128xf32>
      %126 = arith.maximumf %124, %125 : vector<16x128xf32>
      %c0_55 = arith.constant 0 : index
      %c0_56 = arith.constant 0 : index
      %127 = vector.load %arg12[%c0_55, %c0_56] : memref<16x128xf32, #tpu.memory_space<vmem>>, vector<16x128xf32>
      tpu.vector_store %arg12[%c0_55, %c0_56], %126 {strides = array<i32>} : memref<16x128xf32, #tpu.memory_space<vmem>>, vector<16x128xf32>,
    } else {
    }
    %c0_46 = arith.constant 0 : index
    %c0_47 = arith.constant 0 : index
    %120 = vector.load %arg11[%c0_46, %c0_47] : memref<16x128xf32, #tpu.memory_space<vmem>>, vector<16x128xf32>
    %c0_48 = arith.constant 0 : index
    %c0_49 = arith.constant 0 : index
    %121 = vector.load %arg12[%c0_48, %c0_49] : memref<16x128xf32, #tpu.memory_space<vmem>>, vector<16x128xf32>
    %122 = arith.maximumf %120, %121 : vector<16x128xf32>
    %c0_50 = arith.constant 0 : index
    %c0_51 = arith.constant 0 : index
    %123 = vector.load %arg11[%c0_50, %c0_51] : memref<16x128xf32, #tpu.memory_space<vmem>>, vector<16x128xf32>
    tpu.vector_store %arg11[%c0_50, %c0_51], %122 {strides = array<i32>} : memref<16x128xf32, #tpu.memory_space<vmem>>, vector<16x128xf32>,
    return
  }
  func.func @transform_0(%arg0: i32) -> (i32, i32) {
    %c0_i32 = arith.constant 0 : i32
    %c0_i32_0 = arith.constant 0 : i32
    %c0_i32_1 = arith.constant 0 : i32
    return %c0_i32, %c0_i32_0 : i32, i32
  }
  func.func @transform_1(%arg0: i32) -> (i32, i32) {
    %c0_i32 = arith.constant 0 : i32
    %c0_i32_0 = arith.constant 0 : i32
    %c0_i32_1 = arith.constant 0 : i32
    return %c0_i32, %c0_i32_0 : i32, i32
  }
  func.func @transform_2(%arg0: i32) -> (i32, i32) {
    %c0_i32 = arith.constant 0 : i32
    %c0_i32_0 = arith.constant 0 : i32
    %c0_i32_1 = arith.constant 0 : i32
    return %c0_i32, %c0_i32_0 : i32, i32
  }
  func.func @transform_3(%arg0: i32) -> (i32, i32) {
    %c0_i32 = arith.constant 0 : i32
    %c0_i32_0 = arith.constant 0 : i32
    %c0_i32_1 = arith.constant 0 : i32
    return %c0_i32, %c0_i32_0 : i32, i32
  }
  func.func @transform_4(%arg0: i32) -> (i32, i32) {
    %c0_i32 = arith.constant 0 : i32
    %c0_i32_0 = arith.constant 0 : i32
    %c0_i32_1 = arith.constant 0 : i32
    return %c0_i32, %c0_i32_0 : i32, i32
  }
  func.func @transform_5(%arg0: i32) -> (i32, i32, i32) {
    %c0_i32 = arith.constant 0 : i32
    %c0_i32_0 = arith.constant 0 : i32
    %c0_i32_1 = arith.constant 0 : i32
    return %arg0, %c0_i32, %c0_i32_0 : i32, i32, i32
  }
  func.func @transform_6(%arg0: i32) -> (i32, i32, i32) {
    %c0_i32 = arith.constant 0 : i32
    %c0_i32_0 = arith.constant 0 : i32
    %c0_i32_1 = arith.constant 0 : i32
    return %arg0, %c0_i32, %c0_i32_0 : i32, i32, i32
  }
  func.func @transform_7(%arg0: i32) -> (i32, i32, i32) {
    %c0_i32 = arith.constant 0 : i32
    %c0_i32_0 = arith.constant 0 : i32
    %c0_i32_1 = arith.constant 0 : i32
    return %arg0, %c0_i32, %c0_i32_0 : i32, i32, i32
  }
  func.func @transform_8(%arg0: i32) -> (i32, i32, i32) {
    %c0_i32 = arith.constant 0 : i32
    %c0_i32_0 = arith.constant 0 : i32
    %c0_i32_1 = arith.constant 0 : i32
    return %arg0, %c0_i32, %c0_i32_0 : i32, i32, i32
  }
  func.func @transform_9(%arg0: i32) -> (i32, i32, i32) {
    %c0_i32 = arith.constant 0 : i32
    %c0_i32_0 = arith.constant 0 : i32
    %c0_i32_1 = arith.constant 0 : i32
    return %arg0, %c0_i32, %c0_i32_0 : i32, i32, i32
  }
  func.func @transform_10(%arg0: i32) -> (i32, i32) {
    %c0_i32 = arith.constant 0 : i32
    %c0_i32_0 = arith.constant 0 : i32
    %c0_i32_1 = arith.constant 0 : i32
    return %c0_i32, %c0_i32_0 : i32, i32
  }
}

</mosaic_0001>

<llo_original>
// kernel: tpu_custom_call.1
$region0: #{tpu_custom_call.1}
  #allocation0 [shape = 'u32[]', space=smem, size = 0x4, offset = 0x4, fixed_abs, tag = 'smem constant byte address 0x4 - core index']
  #allocation1 [shape = 'u32[144,128]{1,0:T(1,128)}', space=vmem, size = 0x12000, scoped, tag = 'internal scratch']
  #allocation2 [shape = 'f32[16,128]{1,0:T(8,128)}', space=vmem, size = 0x2000, scoped, tag = 'scratch operand']
  %s0 = inlined_call_operand.vmem [shape: f32[16,128], index: 0, kind: input, shape index: {}]
  %s1 = inlined_call_operand.vmem [shape: f32[32,8], index: 1, kind: input, shape index: {}]
  %s2 = inlined_call_operand.vmem [shape: f32[32,16], index: 2, kind: input, shape index: {}]
  %s3 = inlined_call_operand.vmem [shape: f32[16,32], index: 3, kind: input, shape index: {}]
  %s4 = inlined_call_operand.vmem [shape: f32[2,1], index: 4, kind: input, shape index: {}]
  %s5 = inlined_call_operand.hbm [shape: bf16[2,8,128], index: 5, kind: input, shape index: {}]
  %s6 = inlined_call_operand.hbm [shape: bf16[2,128,256], index: 6, kind: input, shape index: {}]
  %s7 = inlined_call_operand.hbm [shape: bf16[2,256,128], index: 7, kind: input, shape index: {}]
  %s8 = inlined_call_operand.vmem [shape: f32[2,8,256], index: 8, kind: input, shape index: {}]
  %s9 = inlined_call_operand.vmem [shape: f32[2,8,128], index: 9, kind: input, shape index: {}]
  %s10 = inlined_call_operand.hbm [shape: f32[16,128], index: 10, kind: output, shape index: {}]
  %s11 = sld [smem:[#allocation0]]
  $region97: #{tpu_custom_call.1} parent=0
    _
  %s13 = ssub.s32 1, %s11
  %s14 = scalar_select 0, %s13, %s11
  $region1: #{tpu_custom_call.1} parent=0
    #allocation3 [shape = 'u8[1024]{0}', space=smem, size = 0x400, scoped, tag = 'input window, operand 4, single buffered']
    #allocation4 [shape = 's32[2]{0}', space=sflag, size = 0x8, scoped, tag = 'scoped memory for tpu_custom_call.1']
    #allocation5 [shape = 's32[2]{0}', space=sflag, size = 0x8, scoped, tag = 'scoped memory for tpu_custom_call.1']
    #allocation6 [shape = 's32[2]{0}', space=sflag, size = 0x8, scoped, tag = 'scoped memory for tpu_custom_call.1']
    #allocation7 [shape = 'u8[4096]{0}', space=vmem, size = 0x1000, scoped, tag = 'input window, operand 5']
    #allocation8 [shape = 'u8[131072]{0}', space=vmem, size = 0x20000, scoped, tag = 'input window, operand 6']
    #allocation9 [shape = 's32[2]{0}', space=sflag, size = 0x8, scoped, tag = 'scoped memory for tpu_custom_call.1']
    #allocation10 [shape = 'u8[131072]{0}', space=vmem, size = 0x20000, scoped, tag = 'input window, operand 7']
    #allocation11 [shape = 'u8[8192]{0}', space=vmem, size = 0x2000, scoped, tag = 'output window, operand 0, single buffered']
    %15 = vsyncpa [#allocation6], 0
    %16 = vsyncpa [#allocation4], 0
    %s17 = scalar_lea.sflag [#allocation4], 1
    %18 = vsyncpa %s17, 0
    %19 = vsyncpa [#allocation9], 0
    %s20 = scalar_lea.sflag [#allocation9], 1
    %21 = vsyncpa %s20, 0
    %22 = vsyncpa [#allocation5], 0
    loop: start=0, step=1, limit=4
    $region2: #{tpu_custom_call.1} parent=1 // loop_pre_header
      _
    $region3: #{tpu_custom_call.1} parent=1 // loop_header
      %s24 = sphi 0, %s28
      %p25 = scmp.ge.s32.totalorder %s24, 4
      %s32 = sphi 0, %s32
      %s34 = sphi 0, %s32
      %s35 = sphi 0, %s34
      %s49 = sphi 0, %s35
      %s53 = sphi 0, %s53
      %s55 = sphi 0, %s53
      %s56 = sphi 0, %s55
      %s70 = sphi 0, %s56
      %s74 = sphi 0, %s74
      %s76 = sphi 0, %s74
      %s77 = sphi 0, %s76
      %s91 = sphi 0, %s77
      %s95 = sphi 0, %s95
      %s97 = sphi 0, %s95
      %s98 = sphi 0, %s97
      %s112 = sphi 0, %s98
      %s116 = sphi 0, %s116
      %s118 = sphi 0, %s116
      %s119 = sphi 0, %s118
      %s133 = sphi 0, %s119
      %s139 = sphi 0, %s141
      %s142 = sphi 0, %s139
      %s143 = sphi 0, %s142
      %s159 = sphi 0, %s143
      %s165 = sphi 0, %s167
      %s168 = sphi 0, %s165
      %s169 = sphi 0, %s168
      %s185 = sphi 0, %s169
      %s191 = sphi 0, %s193
      %s194 = sphi 0, %s191
      %s195 = sphi 0, %s194
      %s211 = sphi 0, %s195
      %s217 = sphi 0, %s219
      %s220 = sphi 0, %s217
      %s221 = sphi 0, %s220
      %s237 = sphi 0, %s221
      %s243 = sphi 0, %s245
      %s246 = sphi 0, %s243
      %s247 = sphi 0, %s246
      %s263 = sphi 0, %s247
      %s267 = sphi 0, %s267
      %s269 = sphi 0, %s267
      %s270 = sphi 0, %s269
      %s284 = sphi 0, %s270
    $region4: #{tpu_custom_call.1} parent=1 // loop_header_branch
      %27 = sbr.rel (%p25) target = $region8
    $region5: #{tpu_custom_call.1} parent=1 // loop_body
      %s29 = ssub.s32 %s24, 1
      %s30 = ssub.s32 %s24, 2
      %s31 = sadd.s32 %s24, 1
      %s33 = sadd.s32 %s32, 1
      %p36 = scmp.eq.s32.totalorder %s24, 1
      %p37 = scmp.ne.s32.totalorder %s32, %s34
      %p38 = scmp.eq.s32.totalorder %s24, 0
      %p39 = por %p37, %p38
      %p40 = scmp.ne.s32.totalorder %s32, %s34
      %p41 = scmp.eq.s32.totalorder %s29, 1
      %p42 = por %p40, %p41
      %p43 = scmp.ne.s32.totalorder %s34, %s35
      %p44 = scmp.eq.s32.totalorder %s29, 0
      %p45 = por %p43, %p44
      %p46 = scmp.ne.s32.totalorder %s34, %s35
      %p47 = scmp.eq.s32.totalorder %s30, 1
      %p48 = por %p46, %p47
      %p50 = scmp.ne.s32.totalorder %s35, %s49
      %p51 = scmp.eq.s32.totalorder %s30, 0
      %p52 = por %p50, %p51
      %s54 = sadd.s32 %s53, 1
      %p57 = scmp.eq.s32.totalorder %s24, 1
      %p58 = scmp.ne.s32.totalorder %s53, %s55
      %p59 = scmp.eq.s32.totalorder %s24, 0
      %p60 = por %p58, %p59
      %p61 = scmp.ne.s32.totalorder %s53, %s55
      %p62 = scmp.eq.s32.totalorder %s29, 1
      %p63 = por %p61, %p62
      %p64 = scmp.ne.s32.totalorder %s55, %s56
      %p65 = scmp.eq.s32.totalorder %s29, 0
      %p66 = por %p64, %p65
      %p67 = scmp.ne.s32.totalorder %s55, %s56
      %p68 = scmp.eq.s32.totalorder %s30, 1
      %p69 = por %p67, %p68
      %p71 = scmp.ne.s32.totalorder %s56, %s70
      %p72 = scmp.eq.s32.totalorder %s30, 0
      %p73 = por %p71, %p72
      %s75 = sadd.s32 %s74, 1
      %p78 = scmp.eq.s32.totalorder %s24, 1
      %p79 = scmp.ne.s32.totalorder %s74, %s76
      %p80 = scmp.eq.s32.totalorder %s24, 0
      %p81 = por %p79, %p80
      %p82 = scmp.ne.s32.totalorder %s74, %s76
      %p83 = scmp.eq.s32.totalorder %s29, 1
      %p84 = por %p82, %p83
      %p85 = scmp.ne.s32.totalorder %s76, %s77
      %p86 = scmp.eq.s32.totalorder %s29, 0
      %p87 = por %p85, %p86
      %p88 = scmp.ne.s32.totalorder %s76, %s77
      %p89 = scmp.eq.s32.totalorder %s30, 1
      %p90 = por %p88, %p89
      %p92 = scmp.ne.s32.totalorder %s77, %s91
      %p93 = scmp.eq.s32.totalorder %s30, 0
      %p94 = por %p92, %p93
      %s96 = sadd.s32 %s95, 1
      %p99 = scmp.eq.s32.totalorder %s24, 1
      %p100 = scmp.ne.s32.totalorder %s95, %s97
      %p101 = scmp.eq.s32.totalorder %s24, 0
      %p102 = por %p100, %p101
      %p103 = scmp.ne.s32.totalorder %s95, %s97
      %p104 = scmp.eq.s32.totalorder %s29, 1
      %p105 = por %p103, %p104
      %p106 = scmp.ne.s32.totalorder %s97, %s98
      %p107 = scmp.eq.s32.totalorder %s29, 0
      %p108 = por %p106, %p107
      %p109 = scmp.ne.s32.totalorder %s97, %s98
      %p110 = scmp.eq.s32.totalorder %s30, 1
      %p111 = por %p109, %p110
      %p113 = scmp.ne.s32.totalorder %s98, %s112
      %p114 = scmp.eq.s32.totalorder %s30, 0
      %p115 = por %p113, %p114
      %s117 = sadd.s32 %s116, 1
      %p120 = scmp.eq.s32.totalorder %s24, 1
      %p121 = scmp.ne.s32.totalorder %s116, %s118
      %p122 = scmp.eq.s32.totalorder %s24, 0
      %p123 = por %p121, %p122
      %p124 = scmp.ne.s32.totalorder %s116, %s118
      %p125 = scmp.eq.s32.totalorder %s29, 1
      %p126 = por %p124, %p125
      %p127 = scmp.ne.s32.totalorder %s118, %s119
      %p128 = scmp.eq.s32.totalorder %s29, 0
      %p129 = por %p127, %p128
      %p130 = scmp.ne.s32.totalorder %s118, %s119
      %p131 = scmp.eq.s32.totalorder %s30, 1
      %p132 = por %p130, %p131
      %p134 = scmp.ne.s32.totalorder %s119, %s133
      %p135 = scmp.eq.s32.totalorder %s30, 0
      %p136 = por %p134, %p135
      %s137 = ssub.s32 %s24, %s31
      %p138 = scmp.eq.s32.totalorder %s137, 0
      %s140 = sadd.s32 %s139, 1
      %s141 = scalar_select %p138, %s139, %s140
      %p144 = pneg %p138
      %p145 = scmp.eq.s32.totalorder %s24, 1
      %p146 = por %p144, %p145
      %p147 = scmp.ne.s32.totalorder %s139, %s142
      %p148 = scmp.eq.s32.totalorder %s24, 0
      %p149 = por %p147, %p148
      %p150 = scmp.ne.s32.totalorder %s139, %s142
      %p151 = scmp.eq.s32.totalorder %s29, 1
      %p152 = por %p150, %p151
      %p153 = scmp.ne.s32.totalorder %s142, %s143
      %p154 = scmp.eq.s32.totalorder %s29, 0
      %p155 = por %p153, %p154
      %p156 = scmp.ne.s32.totalorder %s142, %s143
      %p157 = scmp.eq.s32.totalorder %s30, 1
      %p158 = por %p156, %p157
      %p160 = scmp.ne.s32.totalorder %s143, %s159
      %p161 = scmp.eq.s32.totalorder %s30, 0
      %p162 = por %p160, %p161
      %s163 = ssub.s32 %s24, %s31
      %p164 = scmp.eq.s32.totalorder %s163, 0
      %s166 = sadd.s32 %s165, 1
      %s167 = scalar_select %p164, %s165, %s166
      %p170 = pneg %p164
      %p171 = scmp.eq.s32.totalorder %s24, 1
      %p172 = por %p170, %p171
      %p173 = scmp.ne.s32.totalorder %s165, %s168
      %p174 = scmp.eq.s32.totalorder %s24, 0
      %p175 = por %p173, %p174
      %p176 = scmp.ne.s32.totalorder %s165, %s168
      %p177 = scmp.eq.s32.totalorder %s29, 1
      %p178 = por %p176, %p177
      %p179 = scmp.ne.s32.totalorder %s168, %s169
      %p180 = scmp.eq.s32.totalorder %s29, 0
      %p181 = por %p179, %p180
      %p182 = scmp.ne.s32.totalorder %s168, %s169
      %p183 = scmp.eq.s32.totalorder %s30, 1
      %p184 = por %p182, %p183
      %p186 = scmp.ne.s32.totalorder %s169, %s185
      %p187 = scmp.eq.s32.totalorder %s30, 0
      %p188 = por %p186, %p187
      %s189 = ssub.s32 %s24, %s31
      %p190 = scmp.eq.s32.totalorder %s189, 0
      %s192 = sadd.s32 %s191, 1
      %s193 = scalar_select %p190, %s191, %s192
      %p196 = pneg %p190
      %p197 = scmp.eq.s32.totalorder %s24, 1
      %p198 = por %p196, %p197
      %p199 = scmp.ne.s32.totalorder %s191, %s194
      %p200 = scmp.eq.s32.totalorder %s24, 0
      %p201 = por %p199, %p200
      %p202 = scmp.ne.s32.totalorder %s191, %s194
      %p203 = scmp.eq.s32.totalorder %s29, 1
      %p204 = por %p202, %p203
      %p205 = scmp.ne.s32.totalorder %s194, %s195
      %p206 = scmp.eq.s32.totalorder %s29, 0
      %p207 = por %p205, %p206
      %p208 = scmp.ne.s32.totalorder %s194, %s195
      %p209 = scmp.eq.s32.totalorder %s30, 1
      %p210 = por %p208, %p209
      %p212 = scmp.ne.s32.totalorder %s195, %s211
      %p213 = scmp.eq.s32.totalorder %s30, 0
      %p214 = por %p212, %p213
      %s215 = ssub.s32 %s24, %s31
      %p216 = scmp.eq.s32.totalorder %s215, 0
      %s218 = sadd.s32 %s217, 1
      %s219 = scalar_select %p216, %s217, %s218
      %p222 = pneg %p216
      %p223 = scmp.eq.s32.totalorder %s24, 1
      %p224 = por %p222, %p223
      %p225 = scmp.ne.s32.totalorder %s217, %s220
      %p226 = scmp.eq.s32.totalorder %s24, 0
      %p227 = por %p225, %p226
      %p228 = scmp.ne.s32.totalorder %s217, %s220
      %p229 = scmp.eq.s32.totalorder %s29, 1
      %p230 = por %p228, %p229
      %p231 = scmp.ne.s32.totalorder %s220, %s221
      %p232 = scmp.eq.s32.totalorder %s29, 0
      %p233 = por %p231, %p232
      %p234 = scmp.ne.s32.totalorder %s220, %s221
      %p235 = scmp.eq.s32.totalorder %s30, 1
      %p236 = por %p234, %p235
      %p238 = scmp.ne.s32.totalorder %s221, %s237
      %p239 = scmp.eq.s32.totalorder %s30, 0
      %p240 = por %p238, %p239
      %s241 = ssub.s32 %s24, %s31
      %p242 = scmp.eq.s32.totalorder %s241, 0
      %s244 = sadd.s32 %s243, 1
      %s245 = scalar_select %p242, %s243, %s244
      %p248 = pneg %p242
      %p249 = scmp.eq.s32.totalorder %s24, 1
      %p250 = por %p248, %p249
      %p251 = scmp.ne.s32.totalorder %s243, %s246
      %p252 = scmp.eq.s32.totalorder %s24, 0
      %p253 = por %p251, %p252
      %p254 = scmp.ne.s32.totalorder %s243, %s246
      %p255 = scmp.eq.s32.totalorder %s29, 1
      %p256 = por %p254, %p255
      %p257 = scmp.ne.s32.totalorder %s246, %s247
      %p258 = scmp.eq.s32.totalorder %s29, 0
      %p259 = por %p257, %p258
      %p260 = scmp.ne.s32.totalorder %s246, %s247
      %p261 = scmp.eq.s32.totalorder %s30, 1
      %p262 = por %p260, %p261
      %p264 = scmp.ne.s32.totalorder %s247, %s263
      %p265 = scmp.eq.s32.totalorder %s30, 0
      %p266 = por %p264, %p265
      %s268 = sadd.s32 %s267, 1
      %p271 = scmp.eq.s32.totalorder %s24, 1
      %p272 = scmp.ne.s32.totalorder %s267, %s269
      %p273 = scmp.eq.s32.totalorder %s24, 0
      %p274 = por %p272, %p273
      %p275 = scmp.ne.s32.totalorder %s267, %s269
      %p276 = scmp.eq.s32.totalorder %s29, 1
      %p277 = por %p275, %p276
      %p278 = scmp.ne.s32.totalorder %s269, %s270
      %p279 = scmp.eq.s32.totalorder %s29, 0
      %p280 = por %p278, %p279
      %p281 = scmp.ne.s32.totalorder %s269, %s270
      %p282 = scmp.eq.s32.totalorder %s30, 1
      %p283 = por %p281, %p282
      %p285 = scmp.ne.s32.totalorder %s270, %s284
      %p286 = scmp.eq.s32.totalorder %s30, 0
      %p287 = por %p285, %p286
      %p288 = scmp.le.s32.totalorder 1, %s24
      %p289 = scmp.lt.s32.totalorder %s24, 3
      %p290 = pnand %p288, %p289
      %p291 = pneg %p290
      // Predicated region
      $region9: #{tpu_custom_call.1} parent=5 // pred_check
        _
      $region10: #{tpu_custom_call.1} parent=5 // pred_check_branch
        %293 = sbr.rel (%p290) target = $region12
      $region11: #{tpu_custom_call.1} parent=5 // pred_region
        %s294 = ssub.s32 %s24, 1
        // Predicated region
        $region13: #{tpu_custom_call.1} parent=11 // pred_check
          %p295 = pneg %p45
        $region14: #{tpu_custom_call.1} parent=11 // pred_check_branch
          %297 = sbr.rel (%p295) target = $region16
        $region15: #{tpu_custom_call.1} parent=11 // pred_region
          _
        $region16: #{tpu_custom_call.1} parent=11 // pred_fallthru
          _
        // Predicated region
        $region17: #{tpu_custom_call.1} parent=11 // pred_check
          %p298 = pneg %p66
        $region18: #{tpu_custom_call.1} parent=11 // pred_check_branch
          %300 = sbr.rel (%p298) target = $region20
        $region19: #{tpu_custom_call.1} parent=11 // pred_region
          _
        $region20: #{tpu_custom_call.1} parent=11 // pred_fallthru
          _
        // Predicated region
        $region21: #{tpu_custom_call.1} parent=11 // pred_check
          %p301 = pneg %p87
        $region22: #{tpu_custom_call.1} parent=11 // pred_check_branch
          %303 = sbr.rel (%p301) target = $region24
        $region23: #{tpu_custom_call.1} parent=11 // pred_region
          _
        $region24: #{tpu_custom_call.1} parent=11 // pred_fallthru
          _
        // Predicated region
        $region25: #{tpu_custom_call.1} parent=11 // pred_check
          %p304 = pneg %p108
        $region26: #{tpu_custom_call.1} parent=11 // pred_check_branch
          %306 = sbr.rel (%p304) target = $region28
        $region27: #{tpu_custom_call.1} parent=11 // pred_region
          _
        $region28: #{tpu_custom_call.1} parent=11 // pred_fallthru
          _
        // Predicated region
        $region29: #{tpu_custom_call.1} parent=11 // pred_check
          %p307 = pneg %p129
        $region30: #{tpu_custom_call.1} parent=11 // pred_check_branch
          %309 = sbr.rel (%p307) target = $region32
        $region31: #{tpu_custom_call.1} parent=11 // pred_region
          %s311 = ssub.s32 32, 32
          %312 = vsyncadd [#allocation6], %s311
          %s314 = sshll.u32 %s4, 4
          %s315 = int_to_ptr.vmem [resolvable:$true] %s314
          %317 = dma.vmem_to_smem %s315, 32, [#allocation3], [#allocation6]
        $region32: #{tpu_custom_call.1} parent=11 // pred_fallthru
          _
      $region12: #{tpu_custom_call.1} parent=5 // pred_fallthru
        _
      %p318 = scmp.lt.s32.totalorder %s24, 2
      // Predicated region
      $region33: #{tpu_custom_call.1} parent=5 // pred_check
        %p319 = pneg %p318
      $region34: #{tpu_custom_call.1} parent=5 // pred_check_branch
        %321 = sbr.rel (%p319) target = $region36
      $region35: #{tpu_custom_call.1} parent=5 // pred_region
        // Predicated region
        $region37: #{tpu_custom_call.1} parent=35 // pred_check
          %p322 = pneg %p149
        $region38: #{tpu_custom_call.1} parent=35 // pred_check_branch
          %324 = sbr.rel (%p322) target = $region40
        $region39: #{tpu_custom_call.1} parent=35 // pred_region
          %s325 = sand.u32 %s139, 1
          %s326 = scalar_lea.sflag [#allocation4], %s325
          %s327 = sand.u32 %s139, 1
          %s328 = smul.addr %s327, 4
          %s329 = scalar_lea.vmem [#allocation7], %s328
          %s331 = ssub.s32 64, 64
          %332 = vsyncadd %s326, %s331
          %s333 = smul.addr %s24, 64
          %s334 = scalar_lea.hbm %s5, %s333
          %s336 = sshll.u32 %s329, 4
          %s337 = int_to_ptr.vmem [resolvable:$true] %s336
          %339 = dma.hbm_to_vmem [thread:$0]  %s334, 64, %s337, %s326
        $region40: #{tpu_custom_call.1} parent=35 // pred_fallthru
          _
        // Predicated region
        $region41: #{tpu_custom_call.1} parent=35 // pred_check
          %p340 = pneg %p175
        $region42: #{tpu_custom_call.1} parent=35 // pred_check_branch
          %342 = sbr.rel (%p340) target = $region44
        $region43: #{tpu_custom_call.1} parent=35 // pred_region
          %s343 = sand.u32 %s24, 1
          %s344 = scalar_lea.sflag [#allocation9], %s343
          %s345 = sand.u32 %s165, 1
          %s346 = smul.addr %s345, 128
          %s347 = scalar_lea.vmem [#allocation8], %s346
          %s349 = ssub.s32 2048, 2048
          %350 = vsyncadd %s344, %s349
          %s351 = smul.addr %s24, 32
          %s352 = smul.addr %s351, 64
          %s353 = scalar_lea.hbm %s6, %s352
          %s354 = sshll.u32 %s347, 4
          %s355 = int_to_ptr.vmem [resolvable:$true] %s354
          %360 = dma.hbm_to_vmem [thread:$0]  %s353, 2048, %s355, %s344, 128, 128, 8
        $region44: #{tpu_custom_call.1} parent=35 // pred_fallthru
          _
        // Predicated region
        $region45: #{tpu_custom_call.1} parent=35 // pred_check
          %p361 = pneg %p201
        $region46: #{tpu_custom_call.1} parent=35 // pred_check_branch
          %363 = sbr.rel (%p361) target = $region48
        $region47: #{tpu_custom_call.1} parent=35 // pred_region
          %s364 = sand.u32 %s24, 1
          %s365 = scalar_lea.sflag [#allocation9], %s364
          %s366 = sand.u32 %s191, 1
          %s367 = smul.addr %s366, 128
          %s368 = scalar_lea.vmem [#allocation10], %s367
          %s370 = ssub.s32 2048, 2048
          %371 = vsyncadd %s365, %s370
          %s372 = smul.addr %s24, 32
          %s373 = smul.addr %s372, 64
          %s374 = scalar_lea.hbm %s7, %s373
          %s375 = sshll.u32 %s368, 4
          %s376 = int_to_ptr.vmem [resolvable:$true] %s375
          %381 = dma.hbm_to_vmem [thread:$0]  %s374, 2048, %s376, %s365, 64, 64, 4
        $region48: #{tpu_custom_call.1} parent=35 // pred_fallthru
          _
        // Predicated region
        $region49: #{tpu_custom_call.1} parent=35 // pred_check
          %p382 = pneg %p227
        $region50: #{tpu_custom_call.1} parent=35 // pred_check_branch
          %384 = sbr.rel (%p382) target = $region52
        $region51: #{tpu_custom_call.1} parent=35 // pred_region
          %p385 = scmp.lt.s32.totalorder %s24, 1
          %s386 = scalar_select %p385, %s24, 1
          %s387 = smul.addr %s386, 2
          %s388 = smul.addr %s387, 8
          %s389 = scalar_lea.vmem %s8, %s388
        $region52: #{tpu_custom_call.1} parent=35 // pred_fallthru
          _
        // Predicated region
        $region53: #{tpu_custom_call.1} parent=35 // pred_check
          %p390 = pneg %p253
        $region54: #{tpu_custom_call.1} parent=35 // pred_check_branch
          %392 = sbr.rel (%p390) target = $region56
        $region55: #{tpu_custom_call.1} parent=35 // pred_region
          %p393 = scmp.lt.s32.totalorder %s24, 1
          %s394 = scalar_select %p393, %s24, 1
          %s395 = smul.addr %s394, 8
          %s396 = scalar_lea.vmem %s9, %s395
        $region56: #{tpu_custom_call.1} parent=35 // pred_fallthru
          _
      $region36: #{tpu_custom_call.1} parent=5 // pred_fallthru
        _
      %p397 = scmp.le.s32.totalorder 1, %s24
      %p398 = scmp.lt.s32.totalorder %s24, 3
      %p399 = pnand %p397, %p398
      %p400 = pneg %p399
      // Predicated region
      $region57: #{tpu_custom_call.1} parent=5 // pred_check
        _
      $region58: #{tpu_custom_call.1} parent=5 // pred_check_branch
        %402 = sbr.rel (%p399) target = $region60
      $region59: #{tpu_custom_call.1} parent=5 // pred_region
        %s403 = ssub.s32 %s24, 1
        // Predicated region
        $region61: #{tpu_custom_call.1} parent=59 // pred_check
          %p404 = pneg %p129
        $region62: #{tpu_custom_call.1} parent=59 // pred_check_branch
          %406 = sbr.rel (%p404) target = $region64
        $region63: #{tpu_custom_call.1} parent=59 // pred_region
          %407 = dma.done [#allocation6], 32
        $region64: #{tpu_custom_call.1} parent=59 // pred_fallthru
          _
        %s408 = sand.u32 %s142, 1
        %s409 = scalar_lea.sflag [#allocation4], %s408
        %s410 = sand.u32 %s142, 1
        %s411 = smul.addr %s410, 4
        %s412 = scalar_lea.vmem [#allocation7], %s411
        // Predicated region
        $region65: #{tpu_custom_call.1} parent=59 // pred_check
          %p413 = pneg %p155
        $region66: #{tpu_custom_call.1} parent=59 // pred_check_branch
          %415 = sbr.rel (%p413) target = $region68
        $region67: #{tpu_custom_call.1} parent=59 // pred_region
          %416 = dma.done %s409, 64
        $region68: #{tpu_custom_call.1} parent=59 // pred_fallthru
          _
        %s417 = sand.u32 %s29, 1
        %s418 = scalar_lea.sflag [#allocation9], %s417
        %s419 = sand.u32 %s168, 1
        %s420 = smul.addr %s419, 128
        %s421 = scalar_lea.vmem [#allocation8], %s420
        // Predicated region
        $region69: #{tpu_custom_call.1} parent=59 // pred_check
          %p422 = pneg %p181
        $region70: #{tpu_custom_call.1} parent=59 // pred_check_branch
          %424 = sbr.rel (%p422) target = $region72
        $region71: #{tpu_custom_call.1} parent=59 // pred_region
          %425 = dma.done %s418, 2048
        $region72: #{tpu_custom_call.1} parent=59 // pred_fallthru
          _
        %s426 = sand.u32 %s29, 1
        %s427 = scalar_lea.sflag [#allocation9], %s426
        %s428 = sand.u32 %s194, 1
        %s429 = smul.addr %s428, 128
        %s430 = scalar_lea.vmem [#allocation10], %s429
        // Predicated region
        $region73: #{tpu_custom_call.1} parent=59 // pred_check
          %p431 = pneg %p207
        $region74: #{tpu_custom_call.1} parent=59 // pred_check_branch
          %433 = sbr.rel (%p431) target = $region76
        $region75: #{tpu_custom_call.1} parent=59 // pred_region
          %434 = dma.done %s427, 2048
        $region76: #{tpu_custom_call.1} parent=59 // pred_fallthru
          _
        %435 = sfence
        %p436 = pneg %p45
        %p437 = pneg %p42
        %p438 = pneg %p66
        %p439 = pneg %p63
        %p440 = pneg %p87
        %p441 = pneg %p84
        %p442 = pneg %p108
        %p443 = pneg %p105
        %p444 = pneg %p129
        %p445 = pneg %p126
        %s446 = sand.u32 %s142, 1
        %s447 = scalar_lea.sflag [#allocation4], %s446
        %s448 = sand.u32 %s142, 1
        %s449 = smul.addr %s448, 4
        %s450 = scalar_lea.vmem [#allocation7], %s449
        %p451 = pneg %p155
        %p452 = pneg %p152
        %s453 = sand.u32 %s29, 1
        %s454 = scalar_lea.sflag [#allocation9], %s453
        %s455 = sand.u32 %s168, 1
        %s456 = smul.addr %s455, 128
        %s457 = scalar_lea.vmem [#allocation8], %s456
        %p458 = pneg %p181
        %p459 = pneg %p178
        %s460 = sand.u32 %s29, 1
        %s461 = scalar_lea.sflag [#allocation9], %s460
        %s462 = sand.u32 %s194, 1
        %s463 = smul.addr %s462, 128
        %s464 = scalar_lea.vmem [#allocation10], %s463
        %p465 = pneg %p207
        %p466 = pneg %p204
        %p467 = scmp.lt.s32.totalorder %s29, 1
        %s468 = scalar_select %p467, %s29, 1
        %s469 = smul.addr %s468, 2
        %s470 = smul.addr %s469, 8
        %s471 = scalar_lea.vmem %s8, %s470
        %p472 = pneg %p233
        %p473 = pneg %p230
        %p474 = scmp.lt.s32.totalorder %s29, 1
        %s475 = scalar_select %p474, %s29, 1
        %s476 = smul.addr %s475, 8
        %s477 = scalar_lea.vmem %s9, %s476
        %p478 = pneg %p259
        %p479 = pneg %p256
        %p480 = pneg %p280
        %p481 = pneg %p277
        %p482 = scmp.lt.s32.totalorder %s29, 1
        %s483 = scalar_select %p482, %s29, 1
        %s484 = smul.addr %s483, 2
        %s485 = smul.addr %s484, 8
        %s486 = scalar_lea.vmem %s8, %s485
        %p487 = scmp.lt.s32.totalorder %s29, 1
        %s488 = scalar_select %p487, %s29, 1
        %s489 = smul.addr %s488, 8
        %s490 = scalar_lea.vmem %s9, %s489
        %p491 = scmp.eq.s32.totalorder %s29, 0
        // Predicated region
        $region77: #{tpu_custom_call.1} parent=59 // pred_check
          %p492 = pneg %p491
        $region78: #{tpu_custom_call.1} parent=59 // pred_check_branch
          %494 = sbr.rel (%p492) target = $region80
        $region79: #{tpu_custom_call.1} parent=59 // pred_region
          %v495 = vld [vmem:[%s0] sm:$0xff]
          %v496 = vld [vmem:[%s0 + $0x8] sm:$0xff]
          %497 = vst [vmem:[#allocation2] sm:$0xff] %v495
          %498 = vst [vmem:[#allocation2 + $0x8] sm:$0xff] %v496
          %v499 = vld [vmem:[%s0] sm:$0xff]
          %v500 = vld [vmem:[%s0 + $0x8] sm:$0xff]
          %501 = vst [vmem:[#allocation11] sm:$0xff] %v499
          %502 = vst [vmem:[#allocation11 + $0x8] sm:$0xff] %v500
        $region80: #{tpu_custom_call.1} parent=59 // pred_fallthru
          _
        %v503 = vld [vmem:[%s486] sm:$0xff]
        %v504 = vld [vmem:[%s486 + $0x8] sm:$0xff]
        %v505 = vld [vmem:[%s490] sm:$0xff]
        %v506 = vld [vmem:[#allocation2] sm:$0xff]
        %v507 = vld [vmem:[#allocation2 + $0x8] sm:$0xff]
        %v508 = vld [vmem:[%s1] sm:$0xff]
        %v509 = vld [vmem:[%s1 + $0x8] sm:$0xff]
        %v510 = vld [vmem:[%s1 + $0x10] sm:$0xff]
        %v511 = vld [vmem:[%s1 + $0x18] sm:$0xff]
        %v512 = vld [vmem:[%s412] sm:$0xf]
        %v513 = vunpack.c.l.bf16 %v512
        %v514 = vlaneseq
        %v515 = vshrl.u32 %v514, 7
        %v516 = vsub.s32 0, %v515
        %v517 = vrot.slane %v505, %v516
        %vm518 = vcmask 64512
        %v520 = vsel %vm518, %v508, 0
        %v523 = vsel %vm518, %v509, 0
        %v526 = vsel %vm518, %v510, 0
        %v529 = vsel %vm518, %v511, 0
        %531 = vmatprep.subr.mxu0 0.0
        %532 = vmatpush1.msra.mxu0 0.0
        %533 = vmatprep.subr.mxu0 0.0
        %534 = vmatpush1.msra.mxu0 0.0
        %535 = vmatprep.subr.mxu0 0.0
        %536 = vmatpush1.msra.mxu0 0.0
        %537 = vmatprep.subr.mxu0 0.0
        %538 = vmatpush1.msra.mxu0 0.0
        %539 = vmatprep.subr.mxu0 0.0
        %540 = vmatpush1.msra.mxu0 0.0
        %541 = vmatprep.subr.mxu0 0.0
        %542 = vmatpush1.msra.mxu0 0.0
        %543 = vmatprep.subr.mxu0 0.0
        %544 = vmatpush1.msra.mxu0 0.0
        %545 = vmatprep.subr.mxu0 0.0
        %546 = vmatpush1.msra.mxu0 0.0
        %547 = vmatprep.subr.mxu0 0.0
        %548 = vmatpush1.msra.mxu0 0.0
        %549 = vmatprep.subr.mxu0 0.0
        %550 = vmatpush1.msra.mxu0 0.0
        %551 = vmatprep.subr.mxu0 0.0
        %552 = vmatpush1.msra.mxu0 0.0
        %553 = vmatprep.subr.mxu0 0.0
        %554 = vmatpush1.msra.mxu0 0.0
        %555 = vmatprep.subr.mxu0 0.0
        %556 = vmatpush1.msra.mxu0 0.0
        %557 = vmatprep.subr.mxu0 0.0
        %558 = vmatpush1.msra.mxu0 0.0
        %559 = vmatprep.subr.mxu0 0.0
        %560 = vmatpush1.msra.mxu0 0.0
        %561 = vmatprep.subr.mxu0 0.0
        %562 = vmatpush1.msra.mxu0 %v513
        %563 = vmatprep.subr.mxu0 0.0
        %564 = vmatpush2.msra.mxu0 0.0
        %565 = vmatprep.subr.mxu0 0.0
        %566 = vmatpush2.msra.mxu0 0.0
        %567 = vmatprep.subr.mxu0 0.0
        %568 = vmatpush2.msra.mxu0 0.0
        %569 = vmatprep.subr.mxu0 0.0
        %570 = vmatpush2.msra.mxu0 0.0
        %571 = vmatprep.subr.mxu0 0.0
        %572 = vmatpush2.msra.mxu0 0.0
        %573 = vmatprep.subr.mxu0 0.0
        %574 = vmatpush2.msra.mxu0 0.0
        %575 = vmatprep.subr.mxu0 0.0
        %576 = vmatpush2.msra.mxu0 0.0
        %577 = vmatprep.subr.mxu0 0.0
        %578 = vmatpush2.msra.mxu0 0.0
        %579 = vmatprep.subr.mxu0 0.0
        %580 = vmatpush2.msra.mxu0 0.0
        %581 = vmatprep.subr.mxu0 0.0
        %582 = vmatpush2.msra.mxu0 0.0
        %583 = vmatprep.subr.mxu0 0.0
        %584 = vmatpush2.msra.mxu0 0.0
        %585 = vmatprep.subr.mxu0 0.0
        %586 = vmatpush2.msra.mxu0 0.0
        %587 = vmatprep.subr.mxu0 0.0
        %588 = vmatpush2.msra.mxu0 0.0
        %589 = vmatprep.subr.mxu0 0.0
        %590 = vmatpush2.msra.mxu0 0.0
        %591 = vmatprep.subr.mxu0 0.0
        %592 = vmatpush2.msra.mxu0 0.0
        %593 = vmatprep.subr.mxu0 0.0
        %594 = vmatpush2.msra.mxu0 0.0
        %595 = vmatprep.mubr.f32.mxu0 0.0
        %596 = vmatmul.mubr.f32.gmra.mxu0 %v520
        %v597 = vpop.f32.mrf.mxu0
        %v598 = vadd.f32 %v517, %v597
        %v599 = vpop.f32.mrf.mxu0
        %600 = vmatprep.mubr.f32.mxu0 0.0
        %601 = vmatmul.mubr.f32.gmra.mxu0 %v523
        %v602 = vpop.f32.mrf.mxu0
        %v603 = vadd.f32 %v517, %v602
        %v604 = vpop.f32.mrf.mxu0
        %605 = vmatprep.mubr.f32.mxu0 0.0
        %606 = vmatmul.mubr.f32.gmra.mxu0 %v526
        %v607 = vpop.f32.mrf.mxu0
        %v608 = vadd.f32 %v517, %v607
        %v609 = vpop.f32.mrf.mxu0
        %610 = vmatprep.mubr.f32.mxu0 0.0
        %611 = vmatmul.mubr.f32.gmra.mxu0 %v529
        %v612 = vpop.f32.mrf.mxu0
        %v613 = vadd.f32 %v517, %v612
        %v614 = vpop.f32.mrf.mxu0
        %615 = vdwg.mxu0
        %v616 = vld [vmem:[%s2] sm:$0xff]
        %v617 = vld [vmem:[%s2 + $0x8] sm:$0xff]
        %v618 = vld [vmem:[%s2 + $0x10] sm:$0xff]
        %v619 = vld [vmem:[%s2 + $0x18] sm:$0xff]
        %vm620 = vcmask 130048
        %v622 = vsel %vm620, %v616, 0
        %v625 = vsel %vm620, %v617, 0
        %v628 = vsel %vm620, %v618, 0
        %v631 = vsel %vm620, %v619, 0
        %633 = vmatprep.subr.mxu0 0.0
        %634 = vmatpush1.msra.mxu0 0.0
        %635 = vmatprep.subr.mxu0 0.0
        %636 = vmatpush1.msra.mxu0 0.0
        %637 = vmatprep.subr.mxu0 0.0
        %638 = vmatpush1.msra.mxu0 0.0
        %639 = vmatprep.subr.mxu0 0.0
        %640 = vmatpush1.msra.mxu0 0.0
        %641 = vmatprep.subr.mxu0 0.0
        %642 = vmatpush1.msra.mxu0 0.0
        %643 = vmatprep.subr.mxu0 0.0
        %644 = vmatpush1.msra.mxu0 0.0
        %645 = vmatprep.subr.mxu0 0.0
        %646 = vmatpush1.msra.mxu0 0.0
        %647 = vmatprep.subr.mxu0 0.0
        %648 = vmatpush1.msra.mxu0 0.0
        %649 = vmatprep.subr.mxu0 0.0
        %650 = vmatpush1.msra.mxu0 0.0
        %651 = vmatprep.subr.mxu0 0.0
        %652 = vmatpush1.msra.mxu0 0.0
        %653 = vmatprep.subr.mxu0 0.0
        %654 = vmatpush1.msra.mxu0 0.0
        %655 = vmatprep.subr.mxu0 0.0
        %656 = vmatpush1.msra.mxu0 0.0
        %657 = vmatprep.subr.mxu0 0.0
        %658 = vmatpush1.msra.mxu0 0.0
        %659 = vmatprep.subr.mxu0 0.0
        %660 = vmatpush1.msra.mxu0 0.0
        %661 = vmatprep.subr.mxu0 0.0
        %662 = vmatpush1.msra.mxu0 %v507
        %663 = vmatprep.subr.mxu0 0.0
        %664 = vmatpush1.msra.mxu0 %v506
        %665 = vmatprep.subr.mxu0 0.0
        %666 = vmatpush2.msra.mxu0 0.0
        %667 = vmatprep.subr.mxu0 0.0
        %668 = vmatpush2.msra.mxu0 0.0
        %669 = vmatprep.subr.mxu0 0.0
        %670 = vmatpush2.msra.mxu0 0.0
        %671 = vmatprep.subr.mxu0 0.0
        %672 = vmatpush2.msra.mxu0 0.0
        %673 = vmatprep.subr.mxu0 0.0
        %674 = vmatpush2.msra.mxu0 0.0
        %675 = vmatprep.subr.mxu0 0.0
        %676 = vmatpush2.msra.mxu0 0.0
        %677 = vmatprep.subr.mxu0 0.0
        %678 = vmatpush2.msra.mxu0 0.0
        %679 = vmatprep.subr.mxu0 0.0
        %680 = vmatpush2.msra.mxu0 0.0
        %681 = vmatprep.subr.mxu0 0.0
        %682 = vmatpush2.msra.mxu0 0.0
        %683 = vmatprep.subr.mxu0 0.0
        %684 = vmatpush2.msra.mxu0 0.0
        %685 = vmatprep.subr.mxu0 0.0
        %686 = vmatpush2.msra.mxu0 0.0
        %687 = vmatprep.subr.mxu0 0.0
        %688 = vmatpush2.msra.mxu0 0.0
        %689 = vmatprep.subr.mxu0 0.0
        %690 = vmatpush2.msra.mxu0 0.0
        %691 = vmatprep.subr.mxu0 0.0
        %692 = vmatpush2.msra.mxu0 0.0
        %693 = vmatprep.subr.mxu0 0.0
        %694 = vmatpush2.msra.mxu0 0.0
        %695 = vmatprep.subr.mxu0 0.0
        %696 = vmatpush2.msra.mxu0 0.0
        %697 = vmatprep.mubr.f32.mxu0 0.0
        %698 = vmatmul.mubr.f32.gmra.mxu0 %v622
        %v699 = vpop.f32.mrf.mxu0
        %v700 = vadd.f32 %v598, %v699
        %v701 = vpop.f32.mrf.mxu0
        %702 = vmatprep.mubr.f32.mxu0 0.0
        %703 = vmatmul.mubr.f32.gmra.mxu0 %v625
        %v704 = vpop.f32.mrf.mxu0
        %v705 = vadd.f32 %v603, %v704
        %v706 = vpop.f32.mrf.mxu0
        %707 = vmatprep.mubr.f32.mxu0 0.0
        %708 = vmatmul.mubr.f32.gmra.mxu0 %v628
        %v709 = vpop.f32.mrf.mxu0
        %v710 = vadd.f32 %v608, %v709
        %v711 = vpop.f32.mrf.mxu0
        %712 = vmatprep.mubr.f32.mxu0 0.0
        %713 = vmatmul.mubr.f32.gmra.mxu0 %v631
        %v714 = vpop.f32.mrf.mxu0
        %v715 = vadd.f32 %v613, %v714
        %v716 = vpop.f32.mrf.mxu0
        %717 = vdwg.mxu0
        %v718 = vmax.f32 %v700, 0.0
        %v719 = vmax.f32 %v705, 0.0
        %v720 = vmax.f32 %v710, 0.0
        %v721 = vmax.f32 %v715, 0.0
        %v722 = vld [vmem:[%s3] sm:$0xff]
        %v723 = vld [vmem:[%s3 + $0x8] sm:$0xff]
        %vm724 = vcmask 261120
        %v726 = vsel %vm724, %v722, 0
        %v729 = vsel %vm724, %v723, 0
        %731 = vmatprep.subr.mxu0 0.0
        %732 = vmatpush1.msra.mxu0 0.0
        %733 = vmatprep.subr.mxu0 0.0
        %734 = vmatpush1.msra.mxu0 0.0
        %735 = vmatprep.subr.mxu0 0.0
        %736 = vmatpush1.msra.mxu0 0.0
        %737 = vmatprep.subr.mxu0 0.0
        %738 = vmatpush1.msra.mxu0 0.0
        %739 = vmatprep.subr.mxu0 0.0
        %740 = vmatpush1.msra.mxu0 0.0
        %741 = vmatprep.subr.mxu0 0.0
        %742 = vmatpush1.msra.mxu0 0.0
        %743 = vmatprep.subr.mxu0 0.0
        %744 = vmatpush1.msra.mxu0 0.0
        %745 = vmatprep.subr.mxu0 0.0
        %746 = vmatpush1.msra.mxu0 0.0
        %747 = vmatprep.subr.mxu0 0.0
        %748 = vmatpush1.msra.mxu0 0.0
        %749 = vmatprep.subr.mxu0 0.0
        %750 = vmatpush1.msra.mxu0 0.0
        %751 = vmatprep.subr.mxu0 0.0
        %752 = vmatpush1.msra.mxu0 0.0
        %753 = vmatprep.subr.mxu0 0.0
        %754 = vmatpush1.msra.mxu0 0.0
        %755 = vmatprep.subr.mxu0 0.0
        %756 = vmatpush1.msra.mxu0 %v721
        %757 = vmatprep.subr.mxu0 0.0
        %758 = vmatpush1.msra.mxu0 %v720
        %759 = vmatprep.subr.mxu0 0.0
        %760 = vmatpush1.msra.mxu0 %v719
        %761 = vmatprep.subr.mxu0 0.0
        %762 = vmatpush1.msra.mxu0 %v718
        %763 = vmatprep.subr.mxu0 0.0
        %764 = vmatpush2.msra.mxu0 0.0
        %765 = vmatprep.subr.mxu0 0.0
        %766 = vmatpush2.msra.mxu0 0.0
        %767 = vmatprep.subr.mxu0 0.0
        %768 = vmatpush2.msra.mxu0 0.0
        %769 = vmatprep.subr.mxu0 0.0
        %770 = vmatpush2.msra.mxu0 0.0
        %771 = vmatprep.subr.mxu0 0.0
        %772 = vmatpush2.msra.mxu0 0.0
        %773 = vmatprep.subr.mxu0 0.0
        %774 = vmatpush2.msra.mxu0 0.0
        %775 = vmatprep.subr.mxu0 0.0
        %776 = vmatpush2.msra.mxu0 0.0
        %777 = vmatprep.subr.mxu0 0.0
        %778 = vmatpush2.msra.mxu0 0.0
        %779 = vmatprep.subr.mxu0 0.0
        %780 = vmatpush2.msra.mxu0 0.0
        %781 = vmatprep.subr.mxu0 0.0
        %782 = vmatpush2.msra.mxu0 0.0
        %783 = vmatprep.subr.mxu0 0.0
        %784 = vmatpush2.msra.mxu0 0.0
        %785 = vmatprep.subr.mxu0 0.0
        %786 = vmatpush2.msra.mxu0 0.0
        %787 = vmatprep.subr.mxu0 0.0
        %788 = vmatpush2.msra.mxu0 0.0
        %789 = vmatprep.subr.mxu0 0.0
        %790 = vmatpush2.msra.mxu0 0.0
        %791 = vmatprep.subr.mxu0 0.0
        %792 = vmatpush2.msra.mxu0 0.0
        %793 = vmatprep.subr.mxu0 0.0
        %794 = vmatpush2.msra.mxu0 0.0
        %795 = vmatprep.mubr.f32.mxu0 0.0
        %796 = vmatmul.mubr.f32.gmra.mxu0 %v726
        %v797 = vpop.f32.mrf.mxu0
        %v798 = vadd.f32 0.0, %v797
        %v799 = vpop.f32.mrf.mxu0
        %800 = vmatprep.mubr.f32.mxu0 0.0
        %801 = vmatmul.mubr.f32.gmra.mxu0 %v729
        %v802 = vpop.f32.mrf.mxu0
        %v803 = vadd.f32 0.0, %v802
        %v804 = vpop.f32.mrf.mxu0
        %805 = vdwg.mxu0
        %s806 = smul.u32 %s29, 128
        %s807 = sld [smem:[#allocation3 + %s806]]
        %v808 = vld [vmem:[%s421] sm:$0xff]
        %v809 = vld [vmem:[%s421 + $0x8] sm:$0xff]
        %v810 = vld [vmem:[%s421 + $0x10] sm:$0xff]
        %v811 = vld [vmem:[%s421 + $0x18] sm:$0xff]
        %v812 = vld [vmem:[%s421 + $0x20] sm:$0xff]
        %v813 = vld [vmem:[%s421 + $0x28] sm:$0xff]
        %v814 = vld [vmem:[%s421 + $0x30] sm:$0xff]
        %v815 = vld [vmem:[%s421 + $0x38] sm:$0xff]
        %v816 = vld [vmem:[%s421 + $0x40] sm:$0xff]
        %v817 = vld [vmem:[%s421 + $0x48] sm:$0xff]
        %v818 = vld [vmem:[%s421 + $0x50] sm:$0xff]
        %v819 = vld [vmem:[%s421 + $0x58] sm:$0xff]
        %v820 = vld [vmem:[%s421 + $0x60] sm:$0xff]
        %v821 = vld [vmem:[%s421 + $0x68] sm:$0xff]
        %v822 = vld [vmem:[%s421 + $0x70] sm:$0xff]
        %v823 = vld [vmem:[%s421 + $0x78] sm:$0xff]
        %v824 = vunpack.c.l.bf16 %v808
        %v825 = vunpack.c.h.bf16 %v808
        %v826 = vunpack.c.l.bf16 %v809
        %v827 = vunpack.c.h.bf16 %v809
        %v828 = vunpack.c.l.bf16 %v810
        %v829 = vunpack.c.h.bf16 %v810
        %v830 = vunpack.c.l.bf16 %v811
        %v831 = vunpack.c.h.bf16 %v811
        %v832 = vunpack.c.l.bf16 %v812
        %v833 = vunpack.c.h.bf16 %v812
        %v834 = vunpack.c.l.bf16 %v813
        %v835 = vunpack.c.h.bf16 %v813
        %v836 = vunpack.c.l.bf16 %v814
        %v837 = vunpack.c.h.bf16 %v814
        %v838 = vunpack.c.l.bf16 %v815
        %v839 = vunpack.c.h.bf16 %v815
        %v840 = vunpack.c.l.bf16 %v816
        %v841 = vunpack.c.h.bf16 %v816
        %v842 = vunpack.c.l.bf16 %v817
        %v843 = vunpack.c.h.bf16 %v817
        %v844 = vunpack.c.l.bf16 %v818
        %v845 = vunpack.c.h.bf16 %v818
        %v846 = vunpack.c.l.bf16 %v819
        %v847 = vunpack.c.h.bf16 %v819
        %v848 = vunpack.c.l.bf16 %v820
        %v849 = vunpack.c.h.bf16 %v820
        %v850 = vunpack.c.l.bf16 %v821
        %v851 = vunpack.c.h.bf16 %v821
        %v852 = vunpack.c.l.bf16 %v822
        %v853 = vunpack.c.h.bf16 %v822
        %v854 = vunpack.c.l.bf16 %v823
        %v855 = vunpack.c.h.bf16 %v823
        %v856 = vld [vmem:[%s430] sm:$0xf]
        %v857 = vld [vmem:[%s430 + $0x4] sm:$0xf]
        %v858 = vld [vmem:[%s430 + $0x8] sm:$0xf]
        %v859 = vld [vmem:[%s430 + $0xc] sm:$0xf]
        %v860 = vld [vmem:[%s430 + $0x10] sm:$0xf]
        %v861 = vld [vmem:[%s430 + $0x14] sm:$0xf]
        %v862 = vld [vmem:[%s430 + $0x18] sm:$0xf]
        %v863 = vld [vmem:[%s430 + $0x1c] sm:$0xf]
        %v864 = vld [vmem:[%s430 + $0x20] sm:$0xf]
        %v865 = vld [vmem:[%s430 + $0x24] sm:$0xf]
        %v866 = vld [vmem:[%s430 + $0x28] sm:$0xf]
        %v867 = vld [vmem:[%s430 + $0x2c] sm:$0xf]
        %v868 = vld [vmem:[%s430 + $0x30] sm:$0xf]
        %v869 = vld [vmem:[%s430 + $0x34] sm:$0xf]
        %v870 = vld [vmem:[%s430 + $0x38] sm:$0xf]
        %v871 = vld [vmem:[%s430 + $0x3c] sm:$0xf]
        %v872 = vld [vmem:[%s430 + $0x40] sm:$0xf]
        %v873 = vld [vmem:[%s430 + $0x44] sm:$0xf]
        %v874 = vld [vmem:[%s430 + $0x48] sm:$0xf]
        %v875 = vld [vmem:[%s430 + $0x4c] sm:$0xf]
        %v876 = vld [vmem:[%s430 + $0x50] sm:$0xf]
        %v877 = vld [vmem:[%s430 + $0x54] sm:$0xf]
        %v878 = vld [vmem:[%s430 + $0x58] sm:$0xf]
        %v879 = vld [vmem:[%s430 + $0x5c] sm:$0xf]
        %v880 = vld [vmem:[%s430 + $0x60] sm:$0xf]
        %v881 = vld [vmem:[%s430 + $0x64] sm:$0xf]
        %v882 = vld [vmem:[%s430 + $0x68] sm:$0xf]
        %v883 = vld [vmem:[%s430 + $0x6c] sm:$0xf]
        %v884 = vld [vmem:[%s430 + $0x70] sm:$0xf]
        %v885 = vld [vmem:[%s430 + $0x74] sm:$0xf]
        %v886 = vld [vmem:[%s430 + $0x78] sm:$0xf]
        %v887 = vld [vmem:[%s430 + $0x7c] sm:$0xf]
        %v888 = vunpack.c.l.bf16 %v856
        %v889 = vunpack.c.l.bf16 %v857
        %v890 = vunpack.c.l.bf16 %v858
        %v891 = vunpack.c.l.bf16 %v859
        %v892 = vunpack.c.l.bf16 %v860
        %v893 = vunpack.c.l.bf16 %v861
        %v894 = vunpack.c.l.bf16 %v862
        %v895 = vunpack.c.l.bf16 %v863
        %v896 = vunpack.c.l.bf16 %v864
        %v897 = vunpack.c.l.bf16 %v865
        %v898 = vunpack.c.l.bf16 %v866
        %v899 = vunpack.c.l.bf16 %v867
        %v900 = vunpack.c.l.bf16 %v868
        %v901 = vunpack.c.l.bf16 %v869
        %v902 = vunpack.c.l.bf16 %v870
        %v903 = vunpack.c.l.bf16 %v871
        %v904 = vunpack.c.l.bf16 %v872
        %v905 = vunpack.c.l.bf16 %v873
        %v906 = vunpack.c.l.bf16 %v874
        %v907 = vunpack.c.l.bf16 %v875
        %v908 = vunpack.c.l.bf16 %v876
        %v909 = vunpack.c.l.bf16 %v877
        %v910 = vunpack.c.l.bf16 %v878
        %v911 = vunpack.c.l.bf16 %v879
        %v912 = vunpack.c.l.bf16 %v880
        %v913 = vunpack.c.l.bf16 %v881
        %v914 = vunpack.c.l.bf16 %v882
        %v915 = vunpack.c.l.bf16 %v883
        %v916 = vunpack.c.l.bf16 %v884
        %v917 = vunpack.c.l.bf16 %v885
        %v918 = vunpack.c.l.bf16 %v886
        %v919 = vunpack.c.l.bf16 %v887
        %v920 = vlaneseq
        %v921 = vshrl.u32 %v920, 7
        %v922 = vadd.s32 %v921, 8
        %vm923 = vcmp.lt.s32.totalorder %v921, 16
        %vm924 = vcmp.lt.s32.totalorder %v922, 16
        %v925 = vsel %vm923, 1, 0
        %v926 = vsel %vm924, 1, 0
        %v927 = vcvt.s32.f32 %v925
        %v928 = vcvt.s32.f32 %v926
        %s929 = sadd.f32 %s807, 1.0
        %v930 = vstv %s929
        %v931 = vmul.f32 %v930, %v506
        %v932 = vmul.f32 %v930, %v507
        %v933 = vadd.f32 %v931, %v798
        %v934 = vadd.f32 %v932, %v803
        %v935 = vlaneseq
        %v936 = vshrl.u32 %v935, 7
        %v937 = vsub.s32 0, %v936
        %v938 = vrot.slane %v503, %v937
        %v939 = vlaneseq
        %v940 = vshrl.u32 %v939, 7
        %v941 = vsub.s32 0, %v940
        %v942 = vrot.slane %v504, %v941
        %943 = vmatprep.subr.mxu0 %v855
        %944 = vmatpush1.msra.mxu0 %v854
        %945 = vmatprep.subr.mxu0 %v853
        %946 = vmatpush1.msra.mxu0 %v852
        %947 = vmatprep.subr.mxu0 %v851
        %948 = vmatpush1.msra.mxu0 %v850
        %949 = vmatprep.subr.mxu0 %v849
        %950 = vmatpush1.msra.mxu0 %v848
        %951 = vmatprep.subr.mxu0 %v847
        %952 = vmatpush1.msra.mxu0 %v846
        %953 = vmatprep.subr.mxu0 %v845
        %954 = vmatpush1.msra.mxu0 %v844
        %955 = vmatprep.subr.mxu0 %v843
        %956 = vmatpush1.msra.mxu0 %v842
        %957 = vmatprep.subr.mxu0 %v841
        %958 = vmatpush1.msra.mxu0 %v840
        %959 = vmatprep.subr.mxu0 %v839
        %960 = vmatpush1.msra.mxu0 %v838
        %961 = vmatprep.subr.mxu0 %v837
        %962 = vmatpush1.msra.mxu0 %v836
        %963 = vmatprep.subr.mxu0 %v835
        %964 = vmatpush1.msra.mxu0 %v834
        %965 = vmatprep.subr.mxu0 %v833
        %966 = vmatpush1.msra.mxu0 %v832
        %967 = vmatprep.subr.mxu0 %v831
        %968 = vmatpush1.msra.mxu0 %v830
        %969 = vmatprep.subr.mxu0 %v829
        %970 = vmatpush1.msra.mxu0 %v828
        %971 = vmatprep.subr.mxu0 %v827
        %972 = vmatpush1.msra.mxu0 %v826
        %973 = vmatprep.subr.mxu0 %v825
        %974 = vmatpush1.msra.mxu0 %v824
        %975 = vmatprep.subr.mxu0 0.0
        %976 = vmatpush2.msra.mxu0 0.0
        %977 = vmatprep.subr.mxu0 0.0
        %978 = vmatpush2.msra.mxu0 0.0
        %979 = vmatprep.subr.mxu0 0.0
        %980 = vmatpush2.msra.mxu0 0.0
        %981 = vmatprep.subr.mxu0 0.0
        %982 = vmatpush2.msra.mxu0 0.0
        %983 = vmatprep.subr.mxu0 0.0
        %984 = vmatpush2.msra.mxu0 0.0
        %985 = vmatprep.subr.mxu0 0.0
        %986 = vmatpush2.msra.mxu0 0.0
        %987 = vmatprep.subr.mxu0 0.0
        %988 = vmatpush2.msra.mxu0 0.0
        %989 = vmatprep.subr.mxu0 0.0
        %990 = vmatpush2.msra.mxu0 0.0
        %991 = vmatprep.subr.mxu0 0.0
        %992 = vmatpush2.msra.mxu0 0.0
        %993 = vmatprep.subr.mxu0 0.0
        %994 = vmatpush2.msra.mxu0 0.0
        %995 = vmatprep.subr.mxu0 0.0
        %996 = vmatpush2.msra.mxu0 0.0
        %997 = vmatprep.subr.mxu0 0.0
        %998 = vmatpush2.msra.mxu0 0.0
        %999 = vmatprep.subr.mxu0 0.0
        %1000 = vmatpush2.msra.mxu0 0.0
        %1001 = vmatprep.subr.mxu0 0.0
        %1002 = vmatpush2.msra.mxu0 0.0
        %1003 = vmatprep.subr.mxu0 0.0
        %1004 = vmatpush2.msra.mxu0 0.0
        %1005 = vmatprep.subr.mxu0 0.0
        %1006 = vmatpush2.msra.mxu0 0.0
        %1007 = vmatprep.mubr.f32.mxu0 0.0
        %1008 = vmatmul.mubr.f32.gmra.mxu0 %v933
        %v1009 = vpop.f32.mrf.mxu0
        %v1010 = vadd.f32 %v938, %v1009
        %v1011 = vpop.f32.mrf.mxu0
        %v1012 = vadd.f32 %v942, %v1011
        %1013 = vmatprep.mubr.f32.mxu0 0.0
        %1014 = vmatmul.mubr.f32.gmra.mxu0 %v934
        %v1015 = vpop.f32.mrf.mxu0
        %v1016 = vadd.f32 %v938, %v1015
        %v1017 = vpop.f32.mrf.mxu0
        %v1018 = vadd.f32 %v942, %v1017
        %1019 = vdwg.mxu0
        %v1020 = vmul.f32 %v1010, %v927
        %v1021 = vmul.f32 %v1012, %v927
        %v1022 = vmul.f32 %v1016, %v928
        %v1023 = vmul.f32 %v1018, %v928
        %v1024 = vadd.f32 %v1020, %v1022
        %v1025 = vrot.slane %v1024, 4
        %v1026 = vadd.f32 %v1024, %v1025
        %v1027 = vrot.slane %v1026, 2
        %v1028 = vadd.f32 %v1026, %v1027
        %v1029 = vrot.slane %v1028, 1
        %v1030 = vadd.f32 %v1028, %v1029
        %v1031 = vadd.f32 %v1021, %v1023
        %v1032 = vrot.slane %v1031, 4
        %v1033 = vadd.f32 %v1031, %v1032
        %v1034 = vrot.slane %v1033, 2
        %v1035 = vadd.f32 %v1033, %v1034
        %v1036 = vrot.slane %v1035, 1
        %v1037 = vadd.f32 %v1035, %v1036
        %v1038 = vmul.f32 %v1030, 0.0625
        %v1039 = vmul.f32 %v1037, 0.0625
        %v1040 = vmul.f32 %v503, %v1038
        %v1041 = vmul.f32 %v504, %v1039
        %v1042 = vlaneseq
        %v1043 = vshrl.u32 %v1042, 7
        %v1044 = vsub.s32 3, %v1043
        %v1045 = vrot.slane %v1040, %v1044
        %v1046 = vlaneseq
        %v1047 = vshrl.u32 %v1046, 7
        %v1048 = vsub.s32 3, %v1047
        %v1049 = vrot.slane %v1041, %v1048
        %v1050 = vsub.f32 %v1010, %v1045
        %v1051 = vsub.f32 %v1012, %v1049
        %v1052 = vsub.f32 %v1016, %v1045
        %v1053 = vsub.f32 %v1018, %v1049
        %v1054 = vsub.f32 1.0, %v503
        %v1055 = vsub.f32 1.0, %v504
        %v1056 = vmul.f32 %v1054, %v1038
        %v1057 = vmul.f32 %v1055, %v1039
        %v1058 = vlaneseq
        %v1059 = vshrl.u32 %v1058, 7
        %v1060 = vsub.s32 3, %v1059
        %v1061 = vrot.slane %v1056, %v1060
        %v1062 = vlaneseq
        %v1063 = vshrl.u32 %v1062, 7
        %v1064 = vsub.s32 3, %v1063
        %v1065 = vrot.slane %v1057, %v1064
        %v1066 = vsub.f32 %v1050, %v1061
        %v1067 = vsub.f32 %v1051, %v1065
        %v1068 = vsub.f32 %v1052, %v1061
        %v1069 = vsub.f32 %v1053, %v1065
        %v1070 = vmul.f32 %v1066, %v927
        %v1071 = vmul.f32 %v1067, %v927
        %v1072 = vmul.f32 %v1068, %v928
        %v1073 = vmul.f32 %v1069, %v928
        %v1074 = vmul.f32 %v1070, %v1070
        %v1075 = vmul.f32 %v1071, %v1071
        %v1076 = vmul.f32 %v1072, %v1072
        %v1077 = vmul.f32 %v1073, %v1073
        %v1078 = vadd.f32 %v1074, %v1076
        %v1079 = vrot.slane %v1078, 4
        %v1080 = vadd.f32 %v1078, %v1079
        %v1081 = vrot.slane %v1080, 2
        %v1082 = vadd.f32 %v1080, %v1081
        %v1083 = vrot.slane %v1082, 1
        %v1084 = vadd.f32 %v1082, %v1083
        %v1085 = vadd.f32 %v1075, %v1077
        %v1086 = vrot.slane %v1085, 4
        %v1087 = vadd.f32 %v1085, %v1086
        %v1088 = vrot.slane %v1087, 2
        %v1089 = vadd.f32 %v1087, %v1088
        %v1090 = vrot.slane %v1089, 1
        %v1091 = vadd.f32 %v1089, %v1090
        %v1092 = vmul.f32 %v1084, 0.0625
        %v1093 = vmul.f32 %v1091, 0.0625
        %v1094 = vlaneseq
        %v1095 = vshrl.u32 %v1094, 7
        %v1096 = vsub.s32 1, %v1095
        %v1097 = vrot.slane %v503, %v1096
        %v1098 = vlaneseq
        %v1099 = vshrl.u32 %v1098, 7
        %v1100 = vsub.s32 1, %v1099
        %v1101 = vrot.slane %v504, %v1100
        %v1102 = vmul.f32 %v1097, %v1050
        %v1103 = vmul.f32 %v1101, %v1051
        %v1104 = vmul.f32 %v1097, %v1052
        %v1105 = vmul.f32 %v1101, %v1053
        %v1106 = vadd.f32 %v1092, 1e-05
        %v1107 = vadd.f32 %v1093, 1e-05
        %v1108 = vrsqrt.pop %v1106
        %v1109 = vrsqrt.pop %v1107
        %v1110 = vmul.f32 %v1102, %v1108
        %v1111 = vmul.f32 %v1103, %v1109
        %v1112 = vmul.f32 %v1104, %v1108
        %v1113 = vmul.f32 %v1105, %v1109
        %v1114 = vlaneseq
        %v1115 = vshrl.u32 %v1114, 7
        %v1116 = vsub.s32 2, %v1115
        %v1117 = vrot.slane %v503, %v1116
        %v1118 = vlaneseq
        %v1119 = vshrl.u32 %v1118, 7
        %v1120 = vsub.s32 2, %v1119
        %v1121 = vrot.slane %v504, %v1120
        %v1122 = vadd.f32 %v1110, %v1117
        %v1123 = vadd.f32 %v1111, %v1121
        %v1124 = vadd.f32 %v1112, %v1117
        %v1125 = vadd.f32 %v1113, %v1121
        %v1126 = vmax.f32 %v1122, 0.0
        %v1127 = vmax.f32 %v1123, 0.0
        %v1128 = vmax.f32 %v1124, 0.0
        %v1129 = vmax.f32 %v1125, 0.0
        %v1130 = vlaneseq
        %v1131 = vshrl.u32 %v1130, 7
        %v1132 = vsub.s32 1, %v1131
        %v1133 = vrot.slane %v505, %v1132
        %1134 = vmatprep.subr.mxu0 0.0
        %1135 = vmatpush1.msra.mxu0 %v903
        %1136 = vmatprep.subr.mxu0 0.0
        %1137 = vmatpush1.msra.mxu0 %v902
        %1138 = vmatprep.subr.mxu0 0.0
        %1139 = vmatpush1.msra.mxu0 %v901
        %1140 = vmatprep.subr.mxu0 0.0
        %1141 = vmatpush1.msra.mxu0 %v900
        %1142 = vmatprep.subr.mxu0 0.0
        %1143 = vmatpush1.msra.mxu0 %v899
        %1144 = vmatprep.subr.mxu0 0.0
        %1145 = vmatpush1.msra.mxu0 %v898
        %1146 = vmatprep.subr.mxu0 0.0
        %1147 = vmatpush1.msra.mxu0 %v897
        %1148 = vmatprep.subr.mxu0 0.0
        %1149 = vmatpush1.msra.mxu0 %v896
        %1150 = vmatprep.subr.mxu0 0.0
        %1151 = vmatpush1.msra.mxu0 %v895
        %1152 = vmatprep.subr.mxu0 0.0
        %1153 = vmatpush1.msra.mxu0 %v894
        %1154 = vmatprep.subr.mxu0 0.0
        %1155 = vmatpush1.msra.mxu0 %v893
        %1156 = vmatprep.subr.mxu0 0.0
        %1157 = vmatpush1.msra.mxu0 %v892
        %1158 = vmatprep.subr.mxu0 0.0
        %1159 = vmatpush1.msra.mxu0 %v891
        %1160 = vmatprep.subr.mxu0 0.0
        %1161 = vmatpush1.msra.mxu0 %v890
        %1162 = vmatprep.subr.mxu0 0.0
        %1163 = vmatpush1.msra.mxu0 %v889
        %1164 = vmatprep.subr.mxu0 0.0
        %1165 = vmatpush1.msra.mxu0 %v888
        %1166 = vmatprep.subr.mxu0 0.0
        %1167 = vmatpush2.msra.mxu0 %v919
        %1168 = vmatprep.subr.mxu0 0.0
        %1169 = vmatpush2.msra.mxu0 %v918
        %1170 = vmatprep.subr.mxu0 0.0
        %1171 = vmatpush2.msra.mxu0 %v917
        %1172 = vmatprep.subr.mxu0 0.0
        %1173 = vmatpush2.msra.mxu0 %v916
        %1174 = vmatprep.subr.mxu0 0.0
        %1175 = vmatpush2.msra.mxu0 %v915
        %1176 = vmatprep.subr.mxu0 0.0
        %1177 = vmatpush2.msra.mxu0 %v914
        %1178 = vmatprep.subr.mxu0 0.0
        %1179 = vmatpush2.msra.mxu0 %v913
        %1180 = vmatprep.subr.mxu0 0.0
        %1181 = vmatpush2.msra.mxu0 %v912
        %1182 = vmatprep.subr.mxu0 0.0
        %1183 = vmatpush2.msra.mxu0 %v911
        %1184 = vmatprep.subr.mxu0 0.0
        %1185 = vmatpush2.msra.mxu0 %v910
        %1186 = vmatprep.subr.mxu0 0.0
        %1187 = vmatpush2.msra.mxu0 %v909
        %1188 = vmatprep.subr.mxu0 0.0
        %1189 = vmatpush2.msra.mxu0 %v908
        %1190 = vmatprep.subr.mxu0 0.0
        %1191 = vmatpush2.msra.mxu0 %v907
        %1192 = vmatprep.subr.mxu0 0.0
        %1193 = vmatpush2.msra.mxu0 %v906
        %1194 = vmatprep.subr.mxu0 0.0
        %1195 = vmatpush2.msra.mxu0 %v905
        %1196 = vmatprep.subr.mxu0 0.0
        %1197 = vmatpush2.msra.mxu0 %v904
        %1198 = vmatprep.mubr.f32.mxu0 %v1127
        %1199 = vmatmul.mubr.f32.gmra.mxu0 %v1126
        %v1200 = vpop.f32.mrf.mxu0
        %v1201 = vadd.f32 %v1133, %v1200
        %v1202 = vpop.f32.mrf.mxu0
        %1203 = vmatprep.mubr.f32.mxu0 %v1129
        %1204 = vmatmul.mubr.f32.gmra.mxu0 %v1128
        %v1205 = vpop.f32.mrf.mxu0
        %v1206 = vadd.f32 %v1133, %v1205
        %v1207 = vpop.f32.mrf.mxu0
        %1208 = vdwg.mxu0
        %v1209 = vmul.f32 %v1201, %v927
        %v1210 = vmul.f32 %v1206, %v928
        %v1211 = vadd.f32 %v1209, %v1210
        %v1212 = vrot.slane %v1211, 4
        %v1213 = vadd.f32 %v1211, %v1212
        %v1214 = vrot.slane %v1213, 2
        %v1215 = vadd.f32 %v1213, %v1214
        %v1216 = vrot.slane %v1215, 1
        %v1217 = vadd.f32 %v1215, %v1216
        %v1218 = vmul.f32 %v1217, 0.0625
        %v1219 = vmul.f32 %v505, %v1218
        %v1220 = vlaneseq
        %v1221 = vshrl.u32 %v1220, 7
        %v1222 = vsub.s32 4, %v1221
        %v1223 = vrot.slane %v1219, %v1222
        %v1224 = vsub.f32 %v1201, %v1223
        %v1225 = vsub.f32 %v1206, %v1223
        %v1226 = vsub.f32 1.0, %v505
        %v1227 = vmul.f32 %v1226, %v1218
        %v1228 = vlaneseq
        %v1229 = vshrl.u32 %v1228, 7
        %v1230 = vsub.s32 4, %v1229
        %v1231 = vrot.slane %v1227, %v1230
        %v1232 = vsub.f32 %v1224, %v1231
        %v1233 = vsub.f32 %v1225, %v1231
        %v1234 = vmul.f32 %v1232, %v927
        %v1235 = vmul.f32 %v1233, %v928
        %v1236 = vmul.f32 %v1234, %v1234
        %v1237 = vmul.f32 %v1235, %v1235
        %v1238 = vadd.f32 %v1236, %v1237
        %v1239 = vrot.slane %v1238, 4
        %v1240 = vadd.f32 %v1238, %v1239
        %v1241 = vrot.slane %v1240, 2
        %v1242 = vadd.f32 %v1240, %v1241
        %v1243 = vrot.slane %v1242, 1
        %v1244 = vadd.f32 %v1242, %v1243
        %v1245 = vmul.f32 %v1244, 0.0625
        %v1246 = vlaneseq
        %v1247 = vshrl.u32 %v1246, 7
        %v1248 = vsub.s32 2, %v1247
        %v1249 = vrot.slane %v505, %v1248
        %v1250 = vmul.f32 %v1249, %v1224
        %v1251 = vmul.f32 %v1249, %v1225
        %v1252 = vadd.f32 %v1245, 1e-05
        %v1253 = vrsqrt.pop %v1252
        %v1254 = vmul.f32 %v1250, %v1253
        %v1255 = vmul.f32 %v1251, %v1253
        %v1256 = vlaneseq
        %v1257 = vshrl.u32 %v1256, 7
        %v1258 = vsub.s32 3, %v1257
        %v1259 = vrot.slane %v505, %v1258
        %v1260 = vadd.f32 %v1254, %v1259
        %v1261 = vadd.f32 %v1255, %v1259
        %1262 = vst [vmem:[#allocation2] sm:$0xff] %v1260
        %1263 = vst [vmem:[#allocation2 + $0x8] sm:$0xff] %v1261
        %p1264 = scmp.ne.s32.totalorder %s29, 1
        // Predicated region
        $region81: #{tpu_custom_call.1} parent=59 // pred_check
          %p1265 = pneg %p1264
        $region82: #{tpu_custom_call.1} parent=59 // pred_check_branch
          %1267 = sbr.rel (%p1265) target = $region84
        $region83: #{tpu_custom_call.1} parent=59 // pred_region
          %v1268 = vld [vmem:[#allocation2] sm:$0xff]
          %v1269 = vld [vmem:[#allocation2 + $0x8] sm:$0xff]
          %v1270 = vmax.f32 %v1268, 0.0
          %v1271 = vmax.f32 %v1269, 0.0
          %1272 = vst [vmem:[#allocation2] sm:$0xff] %v1270
          %1273 = vst [vmem:[#allocation2 + $0x8] sm:$0xff] %v1271
        $region84: #{tpu_custom_call.1} parent=59 // pred_fallthru
          _
        %v1274 = vld [vmem:[#allocation11] sm:$0xff]
        %v1275 = vld [vmem:[#allocation11 + $0x8] sm:$0xff]
        %v1276 = vld [vmem:[#allocation2] sm:$0xff]
        %v1277 = vld [vmem:[#allocation2 + $0x8] sm:$0xff]
        %v1278 = vmax.f32 %v1274, %v1276
        %v1279 = vmax.f32 %v1275, %v1277
        %1280 = vst [vmem:[#allocation11] sm:$0xff] %v1278
        %1281 = vst [vmem:[#allocation11 + $0x8] sm:$0xff] %v1279
        // Predicated region
        $region85: #{tpu_custom_call.1} parent=59 // pred_check
          %p1282 = pneg %p277
        $region86: #{tpu_custom_call.1} parent=59 // pred_check_branch
          %1284 = sbr.rel (%p1282) target = $region88
        $region87: #{tpu_custom_call.1} parent=59 // pred_region
          %s1286 = ssub.s32 256, 256
          %1287 = vsyncadd [#allocation5], %s1286
          %s1288 = sshll.u32 [#allocation11], 4
          %s1289 = int_to_ptr.vmem [resolvable:$true] %s1288
          %1294 = dma.vmem_to_hbm [thread:$0]  %s1289, 256, %s10, [#allocation5], 128, 128, 8
        $region88: #{tpu_custom_call.1} parent=59 // pred_fallthru
          _
        // Predicated region
        $region89: #{tpu_custom_call.1} parent=59 // pred_check
          %p1295 = pneg %p277
        $region90: #{tpu_custom_call.1} parent=59 // pred_check_branch
          %1297 = sbr.rel (%p1295) target = $region92
        $region91: #{tpu_custom_call.1} parent=59 // pred_region
          %1298 = dma.done [#allocation5], 256
        $region92: #{tpu_custom_call.1} parent=59 // pred_fallthru
          _
      $region60: #{tpu_custom_call.1} parent=5 // pred_fallthru
        _
      %p1299 = scmp.le.s32.totalorder 2, %s24
      // Predicated region
      $region93: #{tpu_custom_call.1} parent=5 // pred_check
        %p1300 = pneg %p1299
      $region94: #{tpu_custom_call.1} parent=5 // pred_check_branch
        %1302 = sbr.rel (%p1300) target = $region96
      $region95: #{tpu_custom_call.1} parent=5 // pred_region
        %s1303 = ssub.s32 %s24, 2
      $region96: #{tpu_custom_call.1} parent=5 // pred_fallthru
        _
    $region6: #{tpu_custom_call.1} parent=1 // loop_footer
      %s28 = sadd.s32 1, %s24
    $region7: #{tpu_custom_call.1} parent=1 // loop_footer_branch
      %23 = sbr.rel target = $region3
    $region8: #{tpu_custom_call.1} parent=1 // loop_exit
      _
    %1304 = vsyncpa [#allocation4], 1
    %s1305 = scalar_lea.sflag [#allocation4], 1
    %1306 = vsyncpa %s1305, 1
    %1307 = vsyncpa [#allocation9], 1
    %s1308 = scalar_lea.sflag [#allocation9], 1
    %1309 = vsyncpa %s1308, 1
    %1310 = vsyncpa [#allocation5], 1
    %s1311 = scalar_lea.sflag [#allocation5], 1
    %1312 = vsyncpa %s1311, 1
    %1313 = vsyncpa [#allocation6], 1
    %s1314 = scalar_lea.sflag [#allocation6], 1
    %1315 = vsyncpa %s1314, 1

</llo_original>
